<compile_context>
chip_gen: v5e
topology: v5e:2x2
jax: 0.10.0
libtpu: 0.0.40
codegen_flags: <defaults>
</compile_context>

<pallas_src>
import functools

import numpy as np
import jax
import jax.numpy as jnp
from jax import lax
from jax.experimental import pallas as pl
from jax.experimental.pallas import tpu as pltpu

_LN_EPS = 1e-5
_GELU_C = float(np.sqrt(2.0 / np.pi))


def _gelu_tanh(x):
    # TODO(synk): PyTorch nn.GELU() default is the exact erf form; the tanh
    # approximation (== nn.GELU(approximate='tanh')) is used to stay on
    # well-supported Mosaic elementwise ops (max abs diff ~1e-3).
    return 0.5 * x * (1.0 + jnp.tanh(_GELU_C * (x + 0.044715 * x * x * x)))


def _layer_norm(v, g, b):
    mu = jnp.mean(v, axis=-1, keepdims=True)
    c = v - mu
    var = jnp.mean(c * c, axis=-1, keepdims=True)
    return c * lax.rsqrt(var + _LN_EPS) * g + b


# ----------------------------------------------------------------------------------
# Fused transformer block kernel:  out = LN3(FF(LN2(h)) + h) + x,  h = MHA(LN1(x)) + x
# ----------------------------------------------------------------------------------
@functools.lru_cache(maxsize=None)
def _make_block_kernel(heads, dim_head):
    scale = dim_head ** -0.5

    def kernel(x_ref, ctx_ref,
               ln1_g_ref, ln1_b_ref,
               wq_ref, wk_ref, wv_ref, wo_ref, bo_ref,
               ln2_g_ref, ln2_b_ref,
               w1_ref, b1_ref, w2_ref, b2_ref,
               ln3_g_ref, ln3_b_ref,
               out_ref):
        f32 = jnp.float32
        x = x_ref[...].astype(f32)        # (n, d)
        ctx = ctx_ref[...].astype(f32)    # (m, d)

        # ---- PreNorm multi-head cross attention (q from LN(x), k/v from raw ctx) ----
        xn = _layer_norm(x, ln1_g_ref[...].astype(f32), ln1_b_ref[...].astype(f32))
        proj = jnp.zeros_like(x)          # accumulate attn_out @ Wo directly (no concat)
        for h in range(heads):            # static unroll; leading-axis weight indexing
            qh = jnp.dot(xn, wq_ref[h].astype(f32), preferred_element_type=f32)    # (n, dh)
            kh = jnp.dot(ctx, wk_ref[h].astype(f32), preferred_element_type=f32)   # (m, dh)
            vh = jnp.dot(ctx, wv_ref[h].astype(f32), preferred_element_type=f32)   # (m, dh)
            dots = lax.dot_general(qh, kh, (((1,), (1,)), ((), ())),
                                   preferred_element_type=f32) * scale             # (n, m)
            dots = dots - jnp.max(dots, axis=-1, keepdims=True)
            p = jnp.exp(dots)
            attn = p / jnp.sum(p, axis=-1, keepdims=True)
            oh = jnp.dot(attn, vh, preferred_element_type=f32)                     # (n, dh)
            proj = proj + jnp.dot(oh, wo_ref[h].astype(f32), preferred_element_type=f32)
        h1 = proj + bo_ref[...].astype(f32) + x                                    # residual

        # ---- PreNorm feed-forward ----
        xn2 = _layer_norm(h1, ln2_g_ref[...].astype(f32), ln2_b_ref[...].astype(f32))
        mid = _gelu_tanh(jnp.dot(xn2, w1_ref[...].astype(f32),
                                 preferred_element_type=f32) + b1_ref[...].astype(f32))
        ff = jnp.dot(mid, w2_ref[...].astype(f32),
                     preferred_element_type=f32) + b2_ref[...].astype(f32)
        h2 = ff + h1                                                               # residual

        # ---- Transformer's final norm + CrossTransformer's outer residual ----
        t_out = _layer_norm(h2, ln3_g_ref[...].astype(f32), ln3_b_ref[...].astype(f32))
        out_ref[...] = (t_out + x).astype(out_ref.dtype)

    return kernel


def _const_spec(arr):
    nd = arr.ndim
    shape = arr.shape

    def idx(b):
        return (0,) * nd

    return pl.BlockSpec(shape, idx)


def transformer_block(x, ctx, p, heads, dim_head):
    """One fused Transformer(depth=1) block + outer residual, gridded over batch."""
    batch, n, d = x.shape
    m = ctx.shape[1]
    # TODO(synk): for long sequences, tile n/m with an online-softmax (flash) pattern;
    # here the full (n, d)/(m, d) slabs fit VMEM comfortably (also on v7x's 64 MiB).
    weights = (p["ln1_g"], p["ln1_b"],
               p["wq"], p["wk"], p["wv"], p["wo"], p["bo"],
               p["ln2_g"], p["ln2_b"],
               p["w1"], p["b1"], p["w2"], p["b2"],
               p["ln3_g"], p["ln3_b"])
    in_specs = ([pl.BlockSpec((None, n, d), lambda b: (b, 0, 0)),
                 pl.BlockSpec((None, m, d), lambda b: (b, 0, 0))]
                + [_const_spec(w) for w in weights])
    return pl.pallas_call(
        _make_block_kernel(heads, dim_head),
        out_shape=jax.ShapeDtypeStruct((batch, n, d), x.dtype),
        grid_spec=pltpu.PrefetchScalarGridSpec(
            num_scalar_prefetch=0,
            grid=(batch,),
            in_specs=in_specs,
            out_specs=pl.BlockSpec((None, n, d), lambda b: (b, 0, 0)),
        ),
        compiler_params=pltpu.CompilerParams(
            dimension_semantics=("parallel",),
        ),
    )(x, ctx, *weights)


# ----------------------------------------------------------------------------------
# Fused gap/gmp pooling kernel -> lane-dense (b, 4*d) cls token
# ----------------------------------------------------------------------------------
def _cls_pool_kernel(mri_ref, pet_ref, out_ref):
    d = mri_ref.shape[-1]
    mri = mri_ref[...].astype(jnp.float32)   # (n, d)
    pet = pet_ref[...].astype(jnp.float32)
    out_ref[:, 0 * d:1 * d] = jnp.mean(mri, axis=0, keepdims=True).astype(out_ref.dtype)
    out_ref[:, 1 * d:2 * d] = jnp.mean(pet, axis=0, keepdims=True).astype(out_ref.dtype)
    out_ref[:, 2 * d:3 * d] = jnp.max(mri, axis=0, keepdims=True).astype(out_ref.dtype)
    out_ref[:, 3 * d:4 * d] = jnp.max(pet, axis=0, keepdims=True).astype(out_ref.dtype)


def cls_pool(mri, pet):
    batch, n, d = mri.shape
    out = pl.pallas_call(
        _cls_pool_kernel,
        out_shape=jax.ShapeDtypeStruct((batch, 1, 4 * d), mri.dtype),
        grid_spec=pltpu.PrefetchScalarGridSpec(
            num_scalar_prefetch=0,
            grid=(batch,),
            in_specs=[pl.BlockSpec((None, n, d), lambda b: (b, 0, 0)),
                      pl.BlockSpec((None, n, d), lambda b: (b, 0, 0))],
            out_specs=pl.BlockSpec((None, 1, 4 * d), lambda b: (b, 0, 0)),
        ),
        compiler_params=pltpu.CompilerParams(
            dimension_semantics=("parallel",),
        ),
    )(mri, pet)
    return out.reshape(batch, 4 * d)


def cross_transformer_mod_avg(mri_tokens, pet_tokens, layers, heads, dim_head):
    for lp in layers:
        mri_tokens = transformer_block(mri_tokens, pet_tokens, lp["mri"], heads, dim_head)
        pet_tokens = transformer_block(pet_tokens, mri_tokens, lp["pet"], heads, dim_head)
    return cls_pool(mri_tokens, pet_tokens)


# ----------------------------------------------------------------------------------
# Parameters + pure-JAX reference
# ----------------------------------------------------------------------------------
def _init_block_params(key, dim, heads, dim_head, mlp_dim, dtype=jnp.float32):
    ks = jax.random.split(key, 6)
    std = 0.02
    return {
        "ln1_g": jnp.ones((1, dim), dtype), "ln1_b": jnp.zeros((1, dim), dtype),
        "wq": (jax.random.normal(ks[0], (heads, dim, dim_head)) * std).astype(dtype),
        "wk": (jax.random.normal(ks[1], (heads, dim, dim_head)) * std).astype(dtype),
        "wv": (jax.random.normal(ks[2], (heads, dim, dim_head)) * std).astype(dtype),
        "wo": (jax.random.normal(ks[3], (heads, dim_head, dim)) * std).astype(dtype),
        "bo": jnp.zeros((1, dim), dtype),
        "ln2_g": jnp.ones((1, dim), dtype), "ln2_b": jnp.zeros((1, dim), dtype),
        "w1": (jax.random.normal(ks[4], (dim, mlp_dim)) * std).astype(dtype),
        "b1": jnp.zeros((1, mlp_dim), dtype),
        "w2": (jax.random.normal(ks[5], (mlp_dim, dim)) * std).astype(dtype),
        "b2": jnp.zeros((1, dim), dtype),
        "ln3_g": jnp.ones((1, dim), dtype), "ln3_b": jnp.zeros((1, dim), dtype),
    }


def _ref_block(x, ctx, p, heads, dim_head):
    scale = dim_head ** -0.5
    xn = _layer_norm(x, p["ln1_g"], p["ln1_b"])
    q = jnp.einsum("bnd,hde->bhne", xn, p["wq"])
    k = jnp.einsum("bmd,hde->bhme", ctx, p["wk"])
    v = jnp.einsum("bmd,hde->bhme", ctx, p["wv"])
    dots = jnp.einsum("bhne,bhme->bhnm", q, k) * scale
    attn = jax.nn.softmax(dots, axis=-1)
    o = jnp.einsum("bhnm,bhme->bhne", attn, v)
    attn_out = jnp.einsum("bhne,hed->bnd", o, p["wo"]) + p["bo"]
    h1 = attn_out + x
    xn2 = _layer_norm(h1, p["ln2_g"], p["ln2_b"])
    ff = _gelu_tanh(xn2 @ p["w1"] + p["b1"]) @ p["w2"] + p["b2"]
    h2 = ff + h1
    return _layer_norm(h2, p["ln3_g"], p["ln3_b"])


def _ref_forward(mri, pet, layers, heads, dim_head):
    for lp in layers:
        mri = _ref_block(mri, pet, lp["mri"], heads, dim_head) + mri
        pet = _ref_block(pet, mri, lp["pet"], heads, dim_head) + pet
    pooled = [jnp.mean(mri, axis=1), jnp.mean(pet, axis=1),
              jnp.max(mri, axis=1), jnp.max(pet, axis=1)]
    return jnp.concatenate(pooled, axis=1)


if __name__ == "__main__":
    key = jax.random.PRNGKey(0)
    batch, seq, dim = 2, 16, 128
    heads, dim_head, mlp_dim, depth = 4, 32, 256, 2

    k_mri, k_pet, k_par = jax.random.split(key, 3)
    mri = jax.random.normal(k_mri, (batch, seq, dim), dtype=jnp.float32)
    pet = jax.random.normal(k_pet, (batch, seq, dim), dtype=jnp.float32)

    layer_keys = jax.random.split(k_par, 2 * depth)
    layers = [{"mri": _init_block_params(layer_keys[2 * i], dim, heads, dim_head, mlp_dim),
               "pet": _init_block_params(layer_keys[2 * i + 1], dim, heads, dim_head, mlp_dim)}
              for i in range(depth)]

    run = jax.jit(lambda m, p, ls: cross_transformer_mod_avg(m, p, ls, heads, dim_head))
    out = jax.block_until_ready(run(mri, pet, layers))
    assert out.shape == (batch, 4 * dim)

    ref = _ref_forward(mri, pet, layers, heads, dim_head)
    np.testing.assert_allclose(np.asarray(out), np.asarray(ref), rtol=2e-2, atol=2e-2)

    print("KERNEL_OK")
</pallas_src>

<mosaic_0001>
module attributes {stable_mosaic.version = 11 : i64} {
  func.func @_cls_pool_kernel(%arg0: i32, %arg1: memref<1x16x128xf32, #tpu.memory_space<vmem>>, %arg2: memref<1x16x128xf32, #tpu.memory_space<vmem>>, %arg3: memref<1x1x512xf32, #tpu.memory_space<vmem>>) attributes {dimension_semantics = [#tpu.dimension_semantics<parallel>], iteration_bounds = array<i64: 2>, scalar_prefetch = 0 : i64, scratch_operands = 0 : i64, tpu.core_type = #tpu.core_type<tc>, window_params = [{transform_indices = @transform_0, window_bounds = array<i64: 1, 16, 128>}, {transform_indices = @transform_1, window_bounds = array<i64: 1, 16, 128>}, {transform_indices = @transform_2, window_bounds = array<i64: 1, 1, 512>}]} {
    %c0 = arith.constant 0 : index
    %c0_0 = arith.constant 0 : index
    %c0_1 = arith.constant 0 : index
    %0 = vector.load %arg1[%c0, %c0_0, %c0_1] : memref<1x16x128xf32, #tpu.memory_space<vmem>>, vector<1x16x128xf32>
    %1 = vector.shape_cast %0 : vector<1x16x128xf32> to vector<16x128xf32>
    %c0_2 = arith.constant 0 : index
    %c0_3 = arith.constant 0 : index
    %c0_4 = arith.constant 0 : index
    %2 = vector.load %arg2[%c0_2, %c0_3, %c0_4] : memref<1x16x128xf32, #tpu.memory_space<vmem>>, vector<1x16x128xf32>
    %3 = vector.shape_cast %2 : vector<1x16x128xf32> to vector<16x128xf32>
    %cst = arith.constant dense<0.000000e+00> : vector<128xf32>
    %4 = vector.multi_reduction <add>, %1, %cst [0] : vector<16x128xf32> to vector<128xf32>
    %5 = vector.shape_cast %4 : vector<128xf32> to vector<1x128xf32>
    %cst_5 = arith.constant 1.600000e+01 : f32
    %6 = vector.broadcast %cst_5 : f32 to vector<1x128xf32>
    %7 = arith.divf %5, %6 : vector<1x128xf32>
    %c0_6 = arith.constant 0 : index
    %c0_7 = arith.constant 0 : index
    %c0_8 = arith.constant 0 : index
    %8 = vector.load %arg3[%c0_6, %c0_7, %c0_8] : memref<1x1x512xf32, #tpu.memory_space<vmem>>, vector<1x1x128xf32>
    %9 = vector.shape_cast %8 : vector<1x1x128xf32> to vector<1x128xf32>
    %10 = vector.shape_cast %7 : vector<1x128xf32> to vector<1x1x128xf32>
    tpu.vector_store %arg3[%c0_6, %c0_7, %c0_8], %10 {strides = array<i32>} : memref<1x1x512xf32, #tpu.memory_space<vmem>>, vector<1x1x128xf32>,
    %cst_9 = arith.constant dense<0.000000e+00> : vector<128xf32>
    %11 = vector.multi_reduction <add>, %3, %cst_9 [0] : vector<16x128xf32> to vector<128xf32>
    %12 = vector.shape_cast %11 : vector<128xf32> to vector<1x128xf32>
    %cst_10 = arith.constant 1.600000e+01 : f32
    %13 = vector.broadcast %cst_10 : f32 to vector<1x128xf32>
    %14 = arith.divf %12, %13 : vector<1x128xf32>
    %c0_11 = arith.constant 0 : index
    %c0_12 = arith.constant 0 : index
    %c128 = arith.constant 128 : index
    %15 = vector.load %arg3[%c0_11, %c0_12, %c128] : memref<1x1x512xf32, #tpu.memory_space<vmem>>, vector<1x1x128xf32>
    %16 = vector.shape_cast %15 : vector<1x1x128xf32> to vector<1x128xf32>
    %17 = vector.shape_cast %14 : vector<1x128xf32> to vector<1x1x128xf32>
    tpu.vector_store %arg3[%c0_11, %c0_12, %c128], %17 {strides = array<i32>} : memref<1x1x512xf32, #tpu.memory_space<vmem>>, vector<1x1x128xf32>,
    %cst_13 = arith.constant dense<0xFF800000> : vector<128xf32>
    %18 = vector.multi_reduction <maximumf>, %1, %cst_13 [0] : vector<16x128xf32> to vector<128xf32>
    %19 = vector.shape_cast %18 : vector<128xf32> to vector<1x128xf32>
    %c0_14 = arith.constant 0 : index
    %c0_15 = arith.constant 0 : index
    %c256 = arith.constant 256 : index
    %20 = vector.load %arg3[%c0_14, %c0_15, %c256] : memref<1x1x512xf32, #tpu.memory_space<vmem>>, vector<1x1x128xf32>
    %21 = vector.shape_cast %20 : vector<1x1x128xf32> to vector<1x128xf32>
    %22 = vector.shape_cast %19 : vector<1x128xf32> to vector<1x1x128xf32>
    tpu.vector_store %arg3[%c0_14, %c0_15, %c256], %22 {strides = array<i32>} : memref<1x1x512xf32, #tpu.memory_space<vmem>>, vector<1x1x128xf32>,
    %cst_16 = arith.constant dense<0xFF800000> : vector<128xf32>
    %23 = vector.multi_reduction <maximumf>, %3, %cst_16 [0] : vector<16x128xf32> to vector<128xf32>
    %24 = vector.shape_cast %23 : vector<128xf32> to vector<1x128xf32>
    %c0_17 = arith.constant 0 : index
    %c0_18 = arith.constant 0 : index
    %c384 = arith.constant 384 : index
    %25 = vector.load %arg3[%c0_17, %c0_18, %c384] : memref<1x1x512xf32, #tpu.memory_space<vmem>>, vector<1x1x128xf32>
    %26 = vector.shape_cast %25 : vector<1x1x128xf32> to vector<1x128xf32>
    %27 = vector.shape_cast %24 : vector<1x128xf32> to vector<1x1x128xf32>
    tpu.vector_store %arg3[%c0_17, %c0_18, %c384], %27 {strides = array<i32>} : memref<1x1x512xf32, #tpu.memory_space<vmem>>, vector<1x1x128xf32>,
    return
  }
  func.func @transform_0(%arg0: i32) -> (i32, i32, i32) {
    %c0_i32 = arith.constant 0 : i32
    %c0_i32_0 = arith.constant 0 : i32
    %c0_i32_1 = arith.constant 0 : i32
    return %arg0, %c0_i32, %c0_i32_0 : i32, i32, i32
  }
  func.func @transform_1(%arg0: i32) -> (i32, i32, i32) {
    %c0_i32 = arith.constant 0 : i32
    %c0_i32_0 = arith.constant 0 : i32
    %c0_i32_1 = arith.constant 0 : i32
    return %arg0, %c0_i32, %c0_i32_0 : i32, i32, i32
  }
  func.func @transform_2(%arg0: i32) -> (i32, i32, i32) {
    %c0_i32 = arith.constant 0 : i32
    %c0_i32_0 = arith.constant 0 : i32
    %c0_i32_1 = arith.constant 0 : i32
    return %arg0, %c0_i32, %c0_i32_0 : i32, i32, i32
  }
}

module attributes {stable_mosaic.version = 11 : i64} {
  func.func @kernel(%arg0: i32, %arg1: memref<1x16x128xf32, #tpu.memory_space<vmem>>, %arg2: memref<1x16x128xf32, #tpu.memory_space<vmem>>, %arg3: memref<1x128xf32, #tpu.memory_space<vmem>>, %arg4: memref<1x128xf32, #tpu.memory_space<vmem>>, %arg5: memref<4x128x32xf32, #tpu.memory_space<vmem>>, %arg6: memref<4x128x32xf32, #tpu.memory_space<vmem>>, %arg7: memref<4x128x32xf32, #tpu.memory_space<vmem>>, %arg8: memref<4x32x128xf32, #tpu.memory_space<vmem>>, %arg9: memref<1x128xf32, #tpu.memory_space<vmem>>, %arg10: memref<1x128xf32, #tpu.memory_space<vmem>>, %arg11: memref<1x128xf32, #tpu.memory_space<vmem>>, %arg12: memref<128x256xf32, #tpu.memory_space<vmem>>, %arg13: memref<1x256xf32, #tpu.memory_space<vmem>>, %arg14: memref<256x128xf32, #tpu.memory_space<vmem>>, %arg15: memref<1x128xf32, #tpu.memory_space<vmem>>, %arg16: memref<1x128xf32, #tpu.memory_space<vmem>>, %arg17: memref<1x128xf32, #tpu.memory_space<vmem>>, %arg18: memref<1x16x128xf32, #tpu.memory_space<vmem>>) attributes {dimension_semantics = [#tpu.dimension_semantics<parallel>], iteration_bounds = array<i64: 2>, scalar_prefetch = 0 : i64, scratch_operands = 0 : i64, tpu.core_type = #tpu.core_type<tc>, window_params = [{transform_indices = @transform_0, window_bounds = array<i64: 1, 16, 128>}, {transform_indices = @transform_1, window_bounds = array<i64: 1, 16, 128>}, {pipeline_mode = #tpu.pipeline_mode<synchronous>, transform_indices = @transform_2, window_bounds = array<i64: 1, 128>}, {pipeline_mode = #tpu.pipeline_mode<synchronous>, transform_indices = @transform_3, window_bounds = array<i64: 1, 128>}, {pipeline_mode = #tpu.pipeline_mode<synchronous>, transform_indices = @transform_4, window_bounds = array<i64: 4, 128, 32>}, {pipeline_mode = #tpu.pipeline_mode<synchronous>, transform_indices = @transform_5, window_bounds = array<i64: 4, 128, 32>}, {pipeline_mode = #tpu.pipeline_mode<synchronous>, transform_indices = @transform_6, window_bounds = array<i64: 4, 128, 32>}, {pipeline_mode = #tpu.pipeline_mode<synchronous>, transform_indices = @transform_7, window_bounds = array<i64: 4, 32, 128>}, {pipeline_mode = #tpu.pipeline_mode<synchronous>, transform_indices = @transform_8, window_bounds = array<i64: 1, 128>}, {pipeline_mode = #tpu.pipeline_mode<synchronous>, transform_indices = @transform_9, window_bounds = array<i64: 1, 128>}, {pipeline_mode = #tpu.pipeline_mode<synchronous>, transform_indices = @transform_10, window_bounds = array<i64: 1, 128>}, {pipeline_mode = #tpu.pipeline_mode<synchronous>, transform_indices = @transform_11, window_bounds = array<i64: 128, 256>}, {pipeline_mode = #tpu.pipeline_mode<synchronous>, transform_indices = @transform_12, window_bounds = array<i64: 1, 256>}, {pipeline_mode = #tpu.pipeline_mode<synchronous>, transform_indices = @transform_13, window_bounds = array<i64: 256, 128>}, {pipeline_mode = #tpu.pipeline_mode<synchronous>, transform_indices = @transform_14, window_bounds = array<i64: 1, 128>}, {pipeline_mode = #tpu.pipeline_mode<synchronous>, transform_indices = @transform_15, window_bounds = array<i64: 1, 128>}, {pipeline_mode = #tpu.pipeline_mode<synchronous>, transform_indices = @transform_16, window_bounds = array<i64: 1, 128>}, {transform_indices = @transform_17, window_bounds = array<i64: 1, 16, 128>}]} {
    %c0 = arith.constant 0 : index
    %c0_0 = arith.constant 0 : index
    %c0_1 = arith.constant 0 : index
    %0 = vector.load %arg1[%c0, %c0_0, %c0_1] : memref<1x16x128xf32, #tpu.memory_space<vmem>>, vector<1x16x128xf32>
    %1 = vector.shape_cast %0 : vector<1x16x128xf32> to vector<16x128xf32>
    %c0_2 = arith.constant 0 : index
    %c0_3 = arith.constant 0 : index
    %c0_4 = arith.constant 0 : index
    %2 = vector.load %arg2[%c0_2, %c0_3, %c0_4] : memref<1x16x128xf32, #tpu.memory_space<vmem>>, vector<1x16x128xf32>
    %3 = vector.shape_cast %2 : vector<1x16x128xf32> to vector<16x128xf32>
    %c0_5 = arith.constant 0 : index
    %c0_6 = arith.constant 0 : index
    %4 = vector.load %arg3[%c0_5, %c0_6] : memref<1x128xf32, #tpu.memory_space<vmem>>, vector<1x128xf32>
    %c0_7 = arith.constant 0 : index
    %c0_8 = arith.constant 0 : index
    %5 = vector.load %arg4[%c0_7, %c0_8] : memref<1x128xf32, #tpu.memory_space<vmem>>, vector<1x128xf32>
    %cst = arith.constant dense<0.000000e+00> : vector<16xf32>
    %6 = vector.multi_reduction <add>, %1, %cst [1] : vector<16x128xf32> to vector<16xf32>
    %7 = vector.shape_cast %6 : vector<16xf32> to vector<16x1xf32>
    %cst_9 = arith.constant 1.280000e+02 : f32
    %8 = vector.broadcast %cst_9 : f32 to vector<16x1xf32>
    %9 = arith.divf %7, %8 : vector<16x1xf32>
    %10 = vector.broadcast %9 : vector<16x1xf32> to vector<16x128xf32>
    %11 = arith.subf %1, %10 : vector<16x128xf32>
    %12 = arith.mulf %11, %11 : vector<16x128xf32>
    %cst_10 = arith.constant dense<0.000000e+00> : vector<16xf32>
    %13 = vector.multi_reduction <add>, %12, %cst_10 [1] : vector<16x128xf32> to vector<16xf32>
    %14 = vector.shape_cast %13 : vector<16xf32> to vector<16x1xf32>
    %cst_11 = arith.constant 1.280000e+02 : f32
    %15 = vector.broadcast %cst_11 : f32 to vector<16x1xf32>
    %16 = arith.divf %14, %15 : vector<16x1xf32>
    %cst_12 = arith.constant 9.99999974E-6 : f32
    %17 = vector.broadcast %cst_12 : f32 to vector<16x1xf32>
    %18 = arith.addf %16, %17 : vector<16x1xf32>
    %19 = math.rsqrt %18 : vector<16x1xf32>
    %20 = vector.broadcast %19 : vector<16x1xf32> to vector<16x128xf32>
    %21 = arith.mulf %11, %20 : vector<16x128xf32>
    %22 = vector.broadcast %4 : vector<1x128xf32> to vector<16x128xf32>
    %23 = arith.mulf %21, %22 : vector<16x128xf32>
    %24 = vector.broadcast %5 : vector<1x128xf32> to vector<16x128xf32>
    %25 = arith.addf %23, %24 : vector<16x128xf32>
    %cst_13 = arith.constant 0.000000e+00 : f32
    %26 = vector.broadcast %cst_13 : f32 to vector<16x128xf32>
    %c0_14 = arith.constant 0 : index
    %c0_15 = arith.constant 0 : index
    %c0_16 = arith.constant 0 : index
    %27 = vector.load %arg5[%c0_14, %c0_15, %c0_16] : memref<4x128x32xf32, #tpu.memory_space<vmem>>, vector<1x128x32xf32>
    %28 = vector.shape_cast %27 : vector<1x128x32xf32> to vector<128x32xf32>
    %cst_17 = arith.constant dense<0.000000e+00> : vector<16x32xf32>
    %29 = tpu.matmul %25, %28, %cst_17 {dimension_numbers = #tpu.dot_dimension_numbers<[1], [0], [0], [1], [0, 0, 1, 1], [], []>} : vector<16x128xf32>, vector<128x32xf32>, vector<16x32xf32> -> vector<16x32xf32>
    %c0_18 = arith.constant 0 : index
    %c0_19 = arith.constant 0 : index
    %c0_20 = arith.constant 0 : index
    %30 = vector.load %arg6[%c0_18, %c0_19, %c0_20] : memref<4x128x32xf32, #tpu.memory_space<vmem>>, vector<1x128x32xf32>
    %31 = vector.shape_cast %30 : vector<1x128x32xf32> to vector<128x32xf32>
    %cst_21 = arith.constant dense<0.000000e+00> : vector<16x32xf32>
    %32 = tpu.matmul %3, %31, %cst_21 {dimension_numbers = #tpu.dot_dimension_numbers<[1], [0], [0], [1], [0, 0, 1, 1], [], []>} : vector<16x128xf32>, vector<128x32xf32>, vector<16x32xf32> -> vector<16x32xf32>
    %c0_22 = arith.constant 0 : index
    %c0_23 = arith.constant 0 : index
    %c0_24 = arith.constant 0 : index
    %33 = vector.load %arg7[%c0_22, %c0_23, %c0_24] : memref<4x128x32xf32, #tpu.memory_space<vmem>>, vector<1x128x32xf32>
    %34 = vector.shape_cast %33 : vector<1x128x32xf32> to vector<128x32xf32>
    %cst_25 = arith.constant dense<0.000000e+00> : vector<16x32xf32>
    %35 = tpu.matmul %3, %34, %cst_25 {dimension_numbers = #tpu.dot_dimension_numbers<[1], [0], [0], [1], [0, 0, 1, 1], [], []>} : vector<16x128xf32>, vector<128x32xf32>, vector<16x32xf32> -> vector<16x32xf32>
    %cst_26 = arith.constant dense<0.000000e+00> : vector<16x16xf32>
    %36 = tpu.matmul %29, %32, %cst_26 {dimension_numbers = #tpu.dot_dimension_numbers<[1], [1], [0], [0], [0, 0, 1, 0], [], []>} : vector<16x32xf32>, vector<16x32xf32>, vector<16x16xf32> -> vector<16x16xf32>
    %cst_27 = arith.constant 0.176776692 : f32
    %37 = vector.broadcast %cst_27 : f32 to vector<16x16xf32>
    %38 = arith.mulf %36, %37 : vector<16x16xf32>
    %cst_28 = arith.constant dense<0xFF800000> : vector<16xf32>
    %39 = vector.multi_reduction <maximumf>, %38, %cst_28 [1] : vector<16x16xf32> to vector<16xf32>
    %40 = vector.shape_cast %39 : vector<16xf32> to vector<16x1xf32>
    %41 = vector.broadcast %40 : vector<16x1xf32> to vector<16x16xf32>
    %42 = arith.subf %38, %41 : vector<16x16xf32>
    %43 = math.exp %42 : vector<16x16xf32>
    %cst_29 = arith.constant dense<0.000000e+00> : vector<16xf32>
    %44 = vector.multi_reduction <add>, %43, %cst_29 [1] : vector<16x16xf32> to vector<16xf32>
    %45 = vector.shape_cast %44 : vector<16xf32> to vector<16x1xf32>
    %46 = vector.broadcast %45 : vector<16x1xf32> to vector<16x16xf32>
    %47 = arith.divf %43, %46 : vector<16x16xf32>
    %cst_30 = arith.constant dense<0.000000e+00> : vector<16x32xf32>
    %48 = tpu.matmul %47, %35, %cst_30 {dimension_numbers = #tpu.dot_dimension_numbers<[1], [0], [0], [1], [0, 0, 1, 1], [], []>} : vector<16x16xf32>, vector<16x32xf32>, vector<16x32xf32> -> vector<16x32xf32>
    %c0_31 = arith.constant 0 : index
    %c0_32 = arith.constant 0 : index
    %c0_33 = arith.constant 0 : index
    %49 = vector.load %arg8[%c0_31, %c0_32, %c0_33] : memref<4x32x128xf32, #tpu.memory_space<vmem>>, vector<1x32x128xf32>
    %50 = vector.shape_cast %49 : vector<1x32x128xf32> to vector<32x128xf32>
    %cst_34 = arith.constant dense<0.000000e+00> : vector<16x128xf32>
    %51 = tpu.matmul %48, %50, %cst_34 {dimension_numbers = #tpu.dot_dimension_numbers<[1], [0], [0], [1], [0, 0, 1, 1], [], []>} : vector<16x32xf32>, vector<32x128xf32>, vector<16x128xf32> -> vector<16x128xf32>
    %52 = arith.addf %26, %51 : vector<16x128xf32>
    %c1 = arith.constant 1 : index
    %c0_35 = arith.constant 0 : index
    %c0_36 = arith.constant 0 : index
    %53 = vector.load %arg5[%c1, %c0_35, %c0_36] : memref<4x128x32xf32, #tpu.memory_space<vmem>>, vector<1x128x32xf32>
    %54 = vector.shape_cast %53 : vector<1x128x32xf32> to vector<128x32xf32>
    %cst_37 = arith.constant dense<0.000000e+00> : vector<16x32xf32>
    %55 = tpu.matmul %25, %54, %cst_37 {dimension_numbers = #tpu.dot_dimension_numbers<[1], [0], [0], [1], [0, 0, 1, 1], [], []>} : vector<16x128xf32>, vector<128x32xf32>, vector<16x32xf32> -> vector<16x32xf32>
    %c1_38 = arith.constant 1 : index
    %c0_39 = arith.constant 0 : index
    %c0_40 = arith.constant 0 : index
    %56 = vector.load %arg6[%c1_38, %c0_39, %c0_40] : memref<4x128x32xf32, #tpu.memory_space<vmem>>, vector<1x128x32xf32>
    %57 = vector.shape_cast %56 : vector<1x128x32xf32> to vector<128x32xf32>
    %cst_41 = arith.constant dense<0.000000e+00> : vector<16x32xf32>
    %58 = tpu.matmul %3, %57, %cst_41 {dimension_numbers = #tpu.dot_dimension_numbers<[1], [0], [0], [1], [0, 0, 1, 1], [], []>} : vector<16x128xf32>, vector<128x32xf32>, vector<16x32xf32> -> vector<16x32xf32>
    %c1_42 = arith.constant 1 : index
    %c0_43 = arith.constant 0 : index
    %c0_44 = arith.constant 0 : index
    %59 = vector.load %arg7[%c1_42, %c0_43, %c0_44] : memref<4x128x32xf32, #tpu.memory_space<vmem>>, vector<1x128x32xf32>
    %60 = vector.shape_cast %59 : vector<1x128x32xf32> to vector<128x32xf32>
    %cst_45 = arith.constant dense<0.000000e+00> : vector<16x32xf32>
    %61 = tpu.matmul %3, %60, %cst_45 {dimension_numbers = #tpu.dot_dimension_numbers<[1], [0], [0], [1], [0, 0, 1, 1], [], []>} : vector<16x128xf32>, vector<128x32xf32>, vector<16x32xf32> -> vector<16x32xf32>
    %cst_46 = arith.constant dense<0.000000e+00> : vector<16x16xf32>
    %62 = tpu.matmul %55, %58, %cst_46 {dimension_numbers = #tpu.dot_dimension_numbers<[1], [1], [0], [0], [0, 0, 1, 0], [], []>} : vector<16x32xf32>, vector<16x32xf32>, vector<16x16xf32> -> vector<16x16xf32>
    %cst_47 = arith.constant 0.176776692 : f32
    %63 = vector.broadcast %cst_47 : f32 to vector<16x16xf32>
    %64 = arith.mulf %62, %63 : vector<16x16xf32>
    %cst_48 = arith.constant dense<0xFF800000> : vector<16xf32>
    %65 = vector.multi_reduction <maximumf>, %64, %cst_48 [1] : vector<16x16xf32> to vector<16xf32>
    %66 = vector.shape_cast %65 : vector<16xf32> to vector<16x1xf32>
    %67 = vector.broadcast %66 : vector<16x1xf32> to vector<16x16xf32>
    %68 = arith.subf %64, %67 : vector<16x16xf32>
    %69 = math.exp %68 : vector<16x16xf32>
    %cst_49 = arith.constant dense<0.000000e+00> : vector<16xf32>
    %70 = vector.multi_reduction <add>, %69, %cst_49 [1] : vector<16x16xf32> to vector<16xf32>
    %71 = vector.shape_cast %70 : vector<16xf32> to vector<16x1xf32>
    %72 = vector.broadcast %71 : vector<16x1xf32> to vector<16x16xf32>
    %73 = arith.divf %69, %72 : vector<16x16xf32>
    %cst_50 = arith.constant dense<0.000000e+00> : vector<16x32xf32>
    %74 = tpu.matmul %73, %61, %cst_50 {dimension_numbers = #tpu.dot_dimension_numbers<[1], [0], [0], [1], [0, 0, 1, 1], [], []>} : vector<16x16xf32>, vector<16x32xf32>, vector<16x32xf32> -> vector<16x32xf32>
    %c1_51 = arith.constant 1 : index
    %c0_52 = arith.constant 0 : index
    %c0_53 = arith.constant 0 : index
    %75 = vector.load %arg8[%c1_51, %c0_52, %c0_53] : memref<4x32x128xf32, #tpu.memory_space<vmem>>, vector<1x32x128xf32>
    %76 = vector.shape_cast %75 : vector<1x32x128xf32> to vector<32x128xf32>
    %cst_54 = arith.constant dense<0.000000e+00> : vector<16x128xf32>
    %77 = tpu.matmul %74, %76, %cst_54 {dimension_numbers = #tpu.dot_dimension_numbers<[1], [0], [0], [1], [0, 0, 1, 1], [], []>} : vector<16x32xf32>, vector<32x128xf32>, vector<16x128xf32> -> vector<16x128xf32>
    %78 = arith.addf %52, %77 : vector<16x128xf32>
    %c2 = arith.constant 2 : index
    %c0_55 = arith.constant 0 : index
    %c0_56 = arith.constant 0 : index
    %79 = vector.load %arg5[%c2, %c0_55, %c0_56] : memref<4x128x32xf32, #tpu.memory_space<vmem>>, vector<1x128x32xf32>
    %80 = vector.shape_cast %79 : vector<1x128x32xf32> to vector<128x32xf32>
    %cst_57 = arith.constant dense<0.000000e+00> : vector<16x32xf32>
    %81 = tpu.matmul %25, %80, %cst_57 {dimension_numbers = #tpu.dot_dimension_numbers<[1], [0], [0], [1], [0, 0, 1, 1], [], []>} : vector<16x128xf32>, vector<128x32xf32>, vector<16x32xf32> -> vector<16x32xf32>
    %c2_58 = arith.constant 2 : index
    %c0_59 = arith.constant 0 : index
    %c0_60 = arith.constant 0 : index
    %82 = vector.load %arg6[%c2_58, %c0_59, %c0_60] : memref<4x128x32xf32, #tpu.memory_space<vmem>>, vector<1x128x32xf32>
    %83 = vector.shape_cast %82 : vector<1x128x32xf32> to vector<128x32xf32>
    %cst_61 = arith.constant dense<0.000000e+00> : vector<16x32xf32>
    %84 = tpu.matmul %3, %83, %cst_61 {dimension_numbers = #tpu.dot_dimension_numbers<[1], [0], [0], [1], [0, 0, 1, 1], [], []>} : vector<16x128xf32>, vector<128x32xf32>, vector<16x32xf32> -> vector<16x32xf32>
    %c2_62 = arith.constant 2 : index
    %c0_63 = arith.constant 0 : index
    %c0_64 = arith.constant 0 : index
    %85 = vector.load %arg7[%c2_62, %c0_63, %c0_64] : memref<4x128x32xf32, #tpu.memory_space<vmem>>, vector<1x128x32xf32>
    %86 = vector.shape_cast %85 : vector<1x128x32xf32> to vector<128x32xf32>
    %cst_65 = arith.constant dense<0.000000e+00> : vector<16x32xf32>
    %87 = tpu.matmul %3, %86, %cst_65 {dimension_numbers = #tpu.dot_dimension_numbers<[1], [0], [0], [1], [0, 0, 1, 1], [], []>} : vector<16x128xf32>, vector<128x32xf32>, vector<16x32xf32> -> vector<16x32xf32>
    %cst_66 = arith.constant dense<0.000000e+00> : vector<16x16xf32>
    %88 = tpu.matmul %81, %84, %cst_66 {dimension_numbers = #tpu.dot_dimension_numbers<[1], [1], [0], [0], [0, 0, 1, 0], [], []>} : vector<16x32xf32>, vector<16x32xf32>, vector<16x16xf32> -> vector<16x16xf32>
    %cst_67 = arith.constant 0.176776692 : f32
    %89 = vector.broadcast %cst_67 : f32 to vector<16x16xf32>
    %90 = arith.mulf %88, %89 : vector<16x16xf32>
    %cst_68 = arith.constant dense<0xFF800000> : vector<16xf32>
    %91 = vector.multi_reduction <maximumf>, %90, %cst_68 [1] : vector<16x16xf32> to vector<16xf32>
    %92 = vector.shape_cast %91 : vector<16xf32> to vector<16x1xf32>
    %93 = vector.broadcast %92 : vector<16x1xf32> to vector<16x16xf32>
    %94 = arith.subf %90, %93 : vector<16x16xf32>
    %95 = math.exp %94 : vector<16x16xf32>
    %cst_69 = arith.constant dense<0.000000e+00> : vector<16xf32>
    %96 = vector.multi_reduction <add>, %95, %cst_69 [1] : vector<16x16xf32> to vector<16xf32>
    %97 = vector.shape_cast %96 : vector<16xf32> to vector<16x1xf32>
    %98 = vector.broadcast %97 : vector<16x1xf32> to vector<16x16xf32>
    %99 = arith.divf %95, %98 : vector<16x16xf32>
    %cst_70 = arith.constant dense<0.000000e+00> : vector<16x32xf32>
    %100 = tpu.matmul %99, %87, %cst_70 {dimension_numbers = #tpu.dot_dimension_numbers<[1], [0], [0], [1], [0, 0, 1, 1], [], []>} : vector<16x16xf32>, vector<16x32xf32>, vector<16x32xf32> -> vector<16x32xf32>
    %c2_71 = arith.constant 2 : index
    %c0_72 = arith.constant 0 : index
    %c0_73 = arith.constant 0 : index
    %101 = vector.load %arg8[%c2_71, %c0_72, %c0_73] : memref<4x32x128xf32, #tpu.memory_space<vmem>>, vector<1x32x128xf32>
    %102 = vector.shape_cast %101 : vector<1x32x128xf32> to vector<32x128xf32>
    %cst_74 = arith.constant dense<0.000000e+00> : vector<16x128xf32>
    %103 = tpu.matmul %100, %102, %cst_74 {dimension_numbers = #tpu.dot_dimension_numbers<[1], [0], [0], [1], [0, 0, 1, 1], [], []>} : vector<16x32xf32>, vector<32x128xf32>, vector<16x128xf32> -> vector<16x128xf32>
    %104 = arith.addf %78, %103 : vector<16x128xf32>
    %c3 = arith.constant 3 : index
    %c0_75 = arith.constant 0 : index
    %c0_76 = arith.constant 0 : index
    %105 = vector.load %arg5[%c3, %c0_75, %c0_76] : memref<4x128x32xf32, #tpu.memory_space<vmem>>, vector<1x128x32xf32>
    %106 = vector.shape_cast %105 : vector<1x128x32xf32> to vector<128x32xf32>
    %cst_77 = arith.constant dense<0.000000e+00> : vector<16x32xf32>
    %107 = tpu.matmul %25, %106, %cst_77 {dimension_numbers = #tpu.dot_dimension_numbers<[1], [0], [0], [1], [0, 0, 1, 1], [], []>} : vector<16x128xf32>, vector<128x32xf32>, vector<16x32xf32> -> vector<16x32xf32>
    %c3_78 = arith.constant 3 : index
    %c0_79 = arith.constant 0 : index
    %c0_80 = arith.constant 0 : index
    %108 = vector.load %arg6[%c3_78, %c0_79, %c0_80] : memref<4x128x32xf32, #tpu.memory_space<vmem>>, vector<1x128x32xf32>
    %109 = vector.shape_cast %108 : vector<1x128x32xf32> to vector<128x32xf32>
    %cst_81 = arith.constant dense<0.000000e+00> : vector<16x32xf32>
    %110 = tpu.matmul %3, %109, %cst_81 {dimension_numbers = #tpu.dot_dimension_numbers<[1], [0], [0], [1], [0, 0, 1, 1], [], []>} : vector<16x128xf32>, vector<128x32xf32>, vector<16x32xf32> -> vector<16x32xf32>
    %c3_82 = arith.constant 3 : index
    %c0_83 = arith.constant 0 : index
    %c0_84 = arith.constant 0 : index
    %111 = vector.load %arg7[%c3_82, %c0_83, %c0_84] : memref<4x128x32xf32, #tpu.memory_space<vmem>>, vector<1x128x32xf32>
    %112 = vector.shape_cast %111 : vector<1x128x32xf32> to vector<128x32xf32>
    %cst_85 = arith.constant dense<0.000000e+00> : vector<16x32xf32>
    %113 = tpu.matmul %3, %112, %cst_85 {dimension_numbers = #tpu.dot_dimension_numbers<[1], [0], [0], [1], [0, 0, 1, 1], [], []>} : vector<16x128xf32>, vector<128x32xf32>, vector<16x32xf32> -> vector<16x32xf32>
    %cst_86 = arith.constant dense<0.000000e+00> : vector<16x16xf32>
    %114 = tpu.matmul %107, %110, %cst_86 {dimension_numbers = #tpu.dot_dimension_numbers<[1], [1], [0], [0], [0, 0, 1, 0], [], []>} : vector<16x32xf32>, vector<16x32xf32>, vector<16x16xf32> -> vector<16x16xf32>
    %cst_87 = arith.constant 0.176776692 : f32
    %115 = vector.broadcast %cst_87 : f32 to vector<16x16xf32>
    %116 = arith.mulf %114, %115 : vector<16x16xf32>
    %cst_88 = arith.constant dense<0xFF800000> : vector<16xf32>
    %117 = vector.multi_reduction <maximumf>, %116, %cst_88 [1] : vector<16x16xf32> to vector<16xf32>
    %118 = vector.shape_cast %117 : vector<16xf32> to vector<16x1xf32>
    %119 = vector.broadcast %118 : vector<16x1xf32> to vector<16x16xf32>
    %120 = arith.subf %116, %119 : vector<16x16xf32>
    %121 = math.exp %120 : vector<16x16xf32>
    %cst_89 = arith.constant dense<0.000000e+00> : vector<16xf32>
    %122 = vector.multi_reduction <add>, %121, %cst_89 [1] : vector<16x16xf32> to vector<16xf32>
    %123 = vector.shape_cast %122 : vector<16xf32> to vector<16x1xf32>
    %124 = vector.broadcast %123 : vector<16x1xf32> to vector<16x16xf32>
    %125 = arith.divf %121, %124 : vector<16x16xf32>
    %cst_90 = arith.constant dense<0.000000e+00> : vector<16x32xf32>
    %126 = tpu.matmul %125, %113, %cst_90 {dimension_numbers = #tpu.dot_dimension_numbers<[1], [0], [0], [1], [0, 0, 1, 1], [], []>} : vector<16x16xf32>, vector<16x32xf32>, vector<16x32xf32> -> vector<16x32xf32>
    %c3_91 = arith.constant 3 : index
    %c0_92 = arith.constant 0 : index
    %c0_93 = arith.constant 0 : index
    %127 = vector.load %arg8[%c3_91, %c0_92, %c0_93] : memref<4x32x128xf32, #tpu.memory_space<vmem>>, vector<1x32x128xf32>
    %128 = vector.shape_cast %127 : vector<1x32x128xf32> to vector<32x128xf32>
    %cst_94 = arith.constant dense<0.000000e+00> : vector<16x128xf32>
    %129 = tpu.matmul %126, %128, %cst_94 {dimension_numbers = #tpu.dot_dimension_numbers<[1], [0], [0], [1], [0, 0, 1, 1], [], []>} : vector<16x32xf32>, vector<32x128xf32>, vector<16x128xf32> -> vector<16x128xf32>
    %130 = arith.addf %104, %129 : vector<16x128xf32>
    %c0_95 = arith.constant 0 : index
    %c0_96 = arith.constant 0 : index
    %131 = vector.load %arg9[%c0_95, %c0_96] : memref<1x128xf32, #tpu.memory_space<vmem>>, vector<1x128xf32>
    %132 = vector.broadcast %131 : vector<1x128xf32> to vector<16x128xf32>
    %133 = arith.addf %130, %132 : vector<16x128xf32>
    %134 = arith.addf %133, %1 : vector<16x128xf32>
    %c0_97 = arith.constant 0 : index
    %c0_98 = arith.constant 0 : index
    %135 = vector.load %arg10[%c0_97, %c0_98] : memref<1x128xf32, #tpu.memory_space<vmem>>, vector<1x128xf32>
    %c0_99 = arith.constant 0 : index
    %c0_100 = arith.constant 0 : index
    %136 = vector.load %arg11[%c0_99, %c0_100] : memref<1x128xf32, #tpu.memory_space<vmem>>, vector<1x128xf32>
    %cst_101 = arith.constant dense<0.000000e+00> : vector<16xf32>
    %137 = vector.multi_reduction <add>, %134, %cst_101 [1] : vector<16x128xf32> to vector<16xf32>
    %138 = vector.shape_cast %137 : vector<16xf32> to vector<16x1xf32>
    %cst_102 = arith.constant 1.280000e+02 : f32
    %139 = vector.broadcast %cst_102 : f32 to vector<16x1xf32>
    %140 = arith.divf %138, %139 : vector<16x1xf32>
    %141 = vector.broadcast %140 : vector<16x1xf32> to vector<16x128xf32>
    %142 = arith.subf %134, %141 : vector<16x128xf32>
    %143 = arith.mulf %142, %142 : vector<16x128xf32>
    %cst_103 = arith.constant dense<0.000000e+00> : vector<16xf32>
    %144 = vector.multi_reduction <add>, %143, %cst_103 [1] : vector<16x128xf32> to vector<16xf32>
    %145 = vector.shape_cast %144 : vector<16xf32> to vector<16x1xf32>
    %cst_104 = arith.constant 1.280000e+02 : f32
    %146 = vector.broadcast %cst_104 : f32 to vector<16x1xf32>
    %147 = arith.divf %145, %146 : vector<16x1xf32>
    %cst_105 = arith.constant 9.99999974E-6 : f32
    %148 = vector.broadcast %cst_105 : f32 to vector<16x1xf32>
    %149 = arith.addf %147, %148 : vector<16x1xf32>
    %150 = math.rsqrt %149 : vector<16x1xf32>
    %151 = vector.broadcast %150 : vector<16x1xf32> to vector<16x128xf32>
    %152 = arith.mulf %142, %151 : vector<16x128xf32>
    %153 = vector.broadcast %135 : vector<1x128xf32> to vector<16x128xf32>
    %154 = arith.mulf %152, %153 : vector<16x128xf32>
    %155 = vector.broadcast %136 : vector<1x128xf32> to vector<16x128xf32>
    %156 = arith.addf %154, %155 : vector<16x128xf32>
    %c0_106 = arith.constant 0 : index
    %c0_107 = arith.constant 0 : index
    %157 = vector.load %arg12[%c0_106, %c0_107] : memref<128x256xf32, #tpu.memory_space<vmem>>, vector<128x256xf32>
    %cst_108 = arith.constant dense<0.000000e+00> : vector<16x256xf32>
    %158 = tpu.matmul %156, %157, %cst_108 {dimension_numbers = #tpu.dot_dimension_numbers<[1], [0], [0], [1], [0, 0, 1, 1], [], []>} : vector<16x128xf32>, vector<128x256xf32>, vector<16x256xf32> -> vector<16x256xf32>
    %c0_109 = arith.constant 0 : index
    %c0_110 = arith.constant 0 : index
    %159 = vector.load %arg13[%c0_109, %c0_110] : memref<1x256xf32, #tpu.memory_space<vmem>>, vector<1x256xf32>
    %160 = vector.broadcast %159 : vector<1x256xf32> to vector<16x256xf32>
    %161 = arith.addf %158, %160 : vector<16x256xf32>
    %cst_111 = arith.constant 5.000000e-01 : f32
    %162 = vector.broadcast %cst_111 : f32 to vector<16x256xf32>
    %163 = arith.mulf %162, %161 : vector<16x256xf32>
    %cst_112 = arith.constant 4.471500e-02 : f32
    %164 = vector.broadcast %cst_112 : f32 to vector<16x256xf32>
    %165 = arith.mulf %164, %161 : vector<16x256xf32>
    %166 = arith.mulf %165, %161 : vector<16x256xf32>
    %167 = arith.mulf %166, %161 : vector<16x256xf32>
    %168 = arith.addf %161, %167 : vector<16x256xf32>
    %cst_113 = arith.constant 0.797884583 : f32
    %169 = vector.broadcast %cst_113 : f32 to vector<16x256xf32>
    %170 = arith.mulf %169, %168 : vector<16x256xf32>
    %171 = math.tanh %170 : vector<16x256xf32>
    %cst_114 = arith.constant 1.000000e+00 : f32
    %172 = vector.broadcast %cst_114 : f32 to vector<16x256xf32>
    %173 = arith.addf %172, %171 : vector<16x256xf32>
    %174 = arith.mulf %163, %173 : vector<16x256xf32>
    %c0_115 = arith.constant 0 : index
    %c0_116 = arith.constant 0 : index
    %175 = vector.load %arg14[%c0_115, %c0_116] : memref<256x128xf32, #tpu.memory_space<vmem>>, vector<256x128xf32>
    %cst_117 = arith.constant dense<0.000000e+00> : vector<16x128xf32>
    %176 = tpu.matmul %174, %175, %cst_117 {dimension_numbers = #tpu.dot_dimension_numbers<[1], [0], [0], [1], [0, 0, 1, 1], [], []>} : vector<16x256xf32>, vector<256x128xf32>, vector<16x128xf32> -> vector<16x128xf32>
    %c0_118 = arith.constant 0 : index
    %c0_119 = arith.constant 0 : index
    %177 = vector.load %arg15[%c0_118, %c0_119] : memref<1x128xf32, #tpu.memory_space<vmem>>, vector<1x128xf32>
    %178 = vector.broadcast %177 : vector<1x128xf32> to vector<16x128xf32>
    %179 = arith.addf %176, %178 : vector<16x128xf32>
    %180 = arith.addf %179, %134 : vector<16x128xf32>
    %c0_120 = arith.constant 0 : index
    %c0_121 = arith.constant 0 : index
    %181 = vector.load %arg16[%c0_120, %c0_121] : memref<1x128xf32, #tpu.memory_space<vmem>>, vector<1x128xf32>
    %c0_122 = arith.constant 0 : index
    %c0_123 = arith.constant 0 : index
    %182 = vector.load %arg17[%c0_122, %c0_123] : memref<1x128xf32, #tpu.memory_space<vmem>>, vector<1x128xf32>
    %cst_124 = arith.constant dense<0.000000e+00> : vector<16xf32>
    %183 = vector.multi_reduction <add>, %180, %cst_124 [1] : vector<16x128xf32> to vector<16xf32>
    %184 = vector.shape_cast %183 : vector<16xf32> to vector<16x1xf32>
    %cst_125 = arith.constant 1.280000e+02 : f32
    %185 = vector.broadcast %cst_125 : f32 to vector<16x1xf32>
    %186 = arith.divf %184, %185 : vector<16x1xf32>
    %187 = vector.broadcast %186 : vector<16x1xf32> to vector<16x128xf32>
    %188 = arith.subf %180, %187 : vector<16x128xf32>
    %189 = arith.mulf %188, %188 : vector<16x128xf32>
    %cst_126 = arith.constant dense<0.000000e+00> : vector<16xf32>
    %190 = vector.multi_reduction <add>, %189, %cst_126 [1] : vector<16x128xf32> to vector<16xf32>
    %191 = vector.shape_cast %190 : vector<16xf32> to vector<16x1xf32>
    %cst_127 = arith.constant 1.280000e+02 : f32
    %192 = vector.broadcast %cst_127 : f32 to vector<16x1xf32>
    %193 = arith.divf %191, %192 : vector<16x1xf32>
    %cst_128 = arith.constant 9.99999974E-6 : f32
    %194 = vector.broadcast %cst_128 : f32 to vector<16x1xf32>
    %195 = arith.addf %193, %194 : vector<16x1xf32>
    %196 = math.rsqrt %195 : vector<16x1xf32>
    %197 = vector.broadcast %196 : vector<16x1xf32> to vector<16x128xf32>
    %198 = arith.mulf %188, %197 : vector<16x128xf32>
    %199 = vector.broadcast %181 : vector<1x128xf32> to vector<16x128xf32>
    %200 = arith.mulf %198, %199 : vector<16x128xf32>
    %201 = vector.broadcast %182 : vector<1x128xf32> to vector<16x128xf32>
    %202 = arith.addf %200, %201 : vector<16x128xf32>
    %203 = arith.addf %202, %1 : vector<16x128xf32>
    %c0_129 = arith.constant 0 : index
    %c0_130 = arith.constant 0 : index
    %c0_131 = arith.constant 0 : index
    %204 = vector.load %arg18[%c0_129, %c0_130, %c0_131] : memref<1x16x128xf32, #tpu.memory_space<vmem>>, vector<1x16x128xf32>
    %205 = vector.shape_cast %204 : vector<1x16x128xf32> to vector<16x128xf32>
    %206 = vector.shape_cast %203 : vector<16x128xf32> to vector<1x16x128xf32>
    tpu.vector_store %arg18[%c0_129, %c0_130, %c0_131], %206 {strides = array<i32>} : memref<1x16x128xf32, #tpu.memory_space<vmem>>, vector<1x16x128xf32>,
    return
  }
  func.func @transform_0(%arg0: i32) -> (i32, i32, i32) {
    %c0_i32 = arith.constant 0 : i32
    %c0_i32_0 = arith.constant 0 : i32
    %c0_i32_1 = arith.constant 0 : i32
    return %arg0, %c0_i32, %c0_i32_0 : i32, i32, i32
  }
  func.func @transform_1(%arg0: i32) -> (i32, i32, i32) {
    %c0_i32 = arith.constant 0 : i32
    %c0_i32_0 = arith.constant 0 : i32
    %c0_i32_1 = arith.constant 0 : i32
    return %arg0, %c0_i32, %c0_i32_0 : i32, i32, i32
  }
  func.func @transform_2(%arg0: i32) -> (i32, i32) {
    %c0_i32 = arith.constant 0 : i32
    %c0_i32_0 = arith.constant 0 : i32
    %c0_i32_1 = arith.constant 0 : i32
    return %c0_i32, %c0_i32_0 : i32, i32
  }
  func.func @transform_3(%arg0: i32) -> (i32, i32) {
    %c0_i32 = arith.constant 0 : i32
    %c0_i32_0 = arith.constant 0 : i32
    %c0_i32_1 = arith.constant 0 : i32
    return %c0_i32, %c0_i32_0 : i32, i32
  }
  func.func @transform_4(%arg0: i32) -> (i32, i32, i32) {
    %c0_i32 = arith.constant 0 : i32
    %c0_i32_0 = arith.constant 0 : i32
    %c0_i32_1 = arith.constant 0 : i32
    %c0_i32_2 = arith.constant 0 : i32
    return %c0_i32, %c0_i32_0, %c0_i32_1 : i32, i32, i32
  }
  func.func @transform_5(%arg0: i32) -> (i32, i32, i32) {
    %c0_i32 = arith.constant 0 : i32
    %c0_i32_0 = arith.constant 0 : i32
    %c0_i32_1 = arith.constant 0 : i32
    %c0_i32_2 = arith.constant 0 : i32
    return %c0_i32, %c0_i32_0, %c0_i32_1 : i32, i32, i32
  }
  func.func @transform_6(%arg0: i32) -> (i32, i32, i32) {
    %c0_i32 = arith.constant 0 : i32
    %c0_i32_0 = arith.constant 0 : i32
    %c0_i32_1 = arith.constant 0 : i32
    %c0_i32_2 = arith.constant 0 : i32
    return %c0_i32, %c0_i32_0, %c0_i32_1 : i32, i32, i32
  }
  func.func @transform_7(%arg0: i32) -> (i32, i32, i32) {
    %c0_i32 = arith.constant 0 : i32
    %c0_i32_0 = arith.constant 0 : i32
    %c0_i32_1 = arith.constant 0 : i32
    %c0_i32_2 = arith.constant 0 : i32
    return %c0_i32, %c0_i32_0, %c0_i32_1 : i32, i32, i32
  }
  func.func @transform_8(%arg0: i32) -> (i32, i32) {
    %c0_i32 = arith.constant 0 : i32
    %c0_i32_0 = arith.constant 0 : i32
    %c0_i32_1 = arith.constant 0 : i32
    return %c0_i32, %c0_i32_0 : i32, i32
  }
  func.func @transform_9(%arg0: i32) -> (i32, i32) {
    %c0_i32 = arith.constant 0 : i32
    %c0_i32_0 = arith.constant 0 : i32
    %c0_i32_1 = arith.constant 0 : i32
    return %c0_i32, %c0_i32_0 : i32, i32
  }
  func.func @transform_10(%arg0: i32) -> (i32, i32) {
    %c0_i32 = arith.constant 0 : i32
    %c0_i32_0 = arith.constant 0 : i32
    %c0_i32_1 = arith.constant 0 : i32
    return %c0_i32, %c0_i32_0 : i32, i32
  }
  func.func @transform_11(%arg0: i32) -> (i32, i32) {
    %c0_i32 = arith.constant 0 : i32
    %c0_i32_0 = arith.constant 0 : i32
    %c0_i32_1 = arith.constant 0 : i32
    return %c0_i32, %c0_i32_0 : i32, i32
  }
  func.func @transform_12(%arg0: i32) -> (i32, i32) {
    %c0_i32 = arith.constant 0 : i32
    %c0_i32_0 = arith.constant 0 : i32
    %c0_i32_1 = arith.constant 0 : i32
    return %c0_i32, %c0_i32_0 : i32, i32
  }
  func.func @transform_13(%arg0: i32) -> (i32, i32) {
    %c0_i32 = arith.constant 0 : i32
    %c0_i32_0 = arith.constant 0 : i32
    %c0_i32_1 = arith.constant 0 : i32
    return %c0_i32, %c0_i32_0 : i32, i32
  }
  func.func @transform_14(%arg0: i32) -> (i32, i32) {
    %c0_i32 = arith.constant 0 : i32
    %c0_i32_0 = arith.constant 0 : i32
    %c0_i32_1 = arith.constant 0 : i32
    return %c0_i32, %c0_i32_0 : i32, i32
  }
  func.func @transform_15(%arg0: i32) -> (i32, i32) {
    %c0_i32 = arith.constant 0 : i32
    %c0_i32_0 = arith.constant 0 : i32
    %c0_i32_1 = arith.constant 0 : i32
    return %c0_i32, %c0_i32_0 : i32, i32
  }
  func.func @transform_16(%arg0: i32) -> (i32, i32) {
    %c0_i32 = arith.constant 0 : i32
    %c0_i32_0 = arith.constant 0 : i32
    %c0_i32_1 = arith.constant 0 : i32
    return %c0_i32, %c0_i32_0 : i32, i32
  }
  func.func @transform_17(%arg0: i32) -> (i32, i32, i32) {
    %c0_i32 = arith.constant 0 : i32
    %c0_i32_0 = arith.constant 0 : i32
    %c0_i32_1 = arith.constant 0 : i32
    return %arg0, %c0_i32, %c0_i32_0 : i32, i32, i32
  }
}

</mosaic_0001>

<llo_original>
// kernel: _lambda_.9
$region0: #{_lambda_.9}
  #allocation0 [shape = 'u32[]', space=smem, size = 0x4, offset = 0x4, fixed_abs, tag = 'smem constant byte address 0x4 - core index']
  #allocation1 [shape = 'u32[72,128]{1,0:T(1,128)}', space=vmem, size = 0x9000, scoped, tag = 'internal scratch']
  %s0 = inlined_call_operand.vmem [shape: f32[2,16,128], index: 0, kind: input, shape index: {}]
  %s1 = inlined_call_operand.vmem [shape: f32[2,16,128], index: 1, kind: input, shape index: {}]
  %s2 = inlined_call_operand.vmem [shape: f32[2,1,512], index: 2, kind: output, shape index: {}]
  %s3 = sld [smem:[#allocation0]]
  $region41: #{_lambda_.9} parent=0
    _
  %s5 = ssub.s32 1, %s3
  %s6 = scalar_select 0, %s5, %s3
  loop: start=0, step=1, limit=4
  $region2: #{_lambda_.9} parent=0 // loop_pre_header
    _
  $region3: #{_lambda_.9} parent=0 // loop_header
    %s8 = sphi 0, %s12
    %p9 = scmp.ge.s32.totalorder %s8, 4
    %s18 = sphi 0, %s20
    %s21 = sphi 0, %s18
    %s22 = sphi 0, %s21
    %s38 = sphi 0, %s22
    %s44 = sphi 0, %s46
    %s47 = sphi 0, %s44
    %s48 = sphi 0, %s47
    %s64 = sphi 0, %s48
    %s70 = sphi 0, %s72
    %s73 = sphi 0, %s70
    %s74 = sphi 0, %s73
    %s90 = sphi 0, %s74
  $region4: #{_lambda_.9} parent=0 // loop_header_branch
    %11 = sbr.rel (%p9) target = $region8
  $region5: #{_lambda_.9} parent=0 // loop_body
    %s13 = ssub.s32 %s8, 1
    %s14 = ssub.s32 %s8, 2
    %s15 = sadd.s32 %s8, 1
    %s16 = ssub.s32 %s8, %s15
    %p17 = scmp.eq.s32.totalorder %s16, 0
    %s19 = sadd.s32 %s18, 1
    %s20 = scalar_select %p17, %s18, %s19
    %p23 = pneg %p17
    %p24 = scmp.eq.s32.totalorder %s8, 1
    %p25 = por %p23, %p24
    %p26 = scmp.ne.s32.totalorder %s18, %s21
    %p27 = scmp.eq.s32.totalorder %s8, 0
    %p28 = por %p26, %p27
    %p29 = scmp.ne.s32.totalorder %s18, %s21
    %p30 = scmp.eq.s32.totalorder %s13, 1
    %p31 = por %p29, %p30
    %p32 = scmp.ne.s32.totalorder %s21, %s22
    %p33 = scmp.eq.s32.totalorder %s13, 0
    %p34 = por %p32, %p33
    %p35 = scmp.ne.s32.totalorder %s21, %s22
    %p36 = scmp.eq.s32.totalorder %s14, 1
    %p37 = por %p35, %p36
    %p39 = scmp.ne.s32.totalorder %s22, %s38
    %p40 = scmp.eq.s32.totalorder %s14, 0
    %p41 = por %p39, %p40
    %s42 = ssub.s32 %s8, %s15
    %p43 = scmp.eq.s32.totalorder %s42, 0
    %s45 = sadd.s32 %s44, 1
    %s46 = scalar_select %p43, %s44, %s45
    %p49 = pneg %p43
    %p50 = scmp.eq.s32.totalorder %s8, 1
    %p51 = por %p49, %p50
    %p52 = scmp.ne.s32.totalorder %s44, %s47
    %p53 = scmp.eq.s32.totalorder %s8, 0
    %p54 = por %p52, %p53
    %p55 = scmp.ne.s32.totalorder %s44, %s47
    %p56 = scmp.eq.s32.totalorder %s13, 1
    %p57 = por %p55, %p56
    %p58 = scmp.ne.s32.totalorder %s47, %s48
    %p59 = scmp.eq.s32.totalorder %s13, 0
    %p60 = por %p58, %p59
    %p61 = scmp.ne.s32.totalorder %s47, %s48
    %p62 = scmp.eq.s32.totalorder %s14, 1
    %p63 = por %p61, %p62
    %p65 = scmp.ne.s32.totalorder %s48, %s64
    %p66 = scmp.eq.s32.totalorder %s14, 0
    %p67 = por %p65, %p66
    %s68 = ssub.s32 %s8, %s15
    %p69 = scmp.eq.s32.totalorder %s68, 0
    %s71 = sadd.s32 %s70, 1
    %s72 = scalar_select %p69, %s70, %s71
    %p75 = pneg %p69
    %p76 = scmp.eq.s32.totalorder %s8, 1
    %p77 = por %p75, %p76
    %p78 = scmp.ne.s32.totalorder %s70, %s73
    %p79 = scmp.eq.s32.totalorder %s8, 0
    %p80 = por %p78, %p79
    %p81 = scmp.ne.s32.totalorder %s70, %s73
    %p82 = scmp.eq.s32.totalorder %s13, 1
    %p83 = por %p81, %p82
    %p84 = scmp.ne.s32.totalorder %s73, %s74
    %p85 = scmp.eq.s32.totalorder %s13, 0
    %p86 = por %p84, %p85
    %p87 = scmp.ne.s32.totalorder %s73, %s74
    %p88 = scmp.eq.s32.totalorder %s14, 1
    %p89 = por %p87, %p88
    %p91 = scmp.ne.s32.totalorder %s74, %s90
    %p92 = scmp.eq.s32.totalorder %s14, 0
    %p93 = por %p91, %p92
    %p94 = scmp.le.s32.totalorder 1, %s8
    %p95 = scmp.lt.s32.totalorder %s8, 3
    %p96 = pnand %p94, %p95
    %p97 = pneg %p96
    // Predicated region
    $region9: #{_lambda_.9} parent=5 // pred_check
      _
    $region10: #{_lambda_.9} parent=5 // pred_check_branch
      %99 = sbr.rel (%p96) target = $region12
    $region11: #{_lambda_.9} parent=5 // pred_region
      %s100 = ssub.s32 %s8, 1
    $region12: #{_lambda_.9} parent=5 // pred_fallthru
      _
    %p101 = scmp.lt.s32.totalorder %s8, 2
    // Predicated region
    $region13: #{_lambda_.9} parent=5 // pred_check
      %p102 = pneg %p101
    $region14: #{_lambda_.9} parent=5 // pred_check_branch
      %104 = sbr.rel (%p102) target = $region16
    $region15: #{_lambda_.9} parent=5 // pred_region
      // Predicated region
      $region17: #{_lambda_.9} parent=15 // pred_check
        %p105 = pneg %p28
      $region18: #{_lambda_.9} parent=15 // pred_check_branch
        %107 = sbr.rel (%p105) target = $region20
      $region19: #{_lambda_.9} parent=15 // pred_region
        %p108 = scmp.lt.s32.totalorder %s8, 1
        %s109 = scalar_select %p108, %s8, 1
        %s110 = smul.addr %s109, 2
        %s111 = smul.addr %s110, 8
        %s112 = scalar_lea.vmem %s0, %s111
      $region20: #{_lambda_.9} parent=15 // pred_fallthru
        _
      // Predicated region
      $region21: #{_lambda_.9} parent=15 // pred_check
        %p113 = pneg %p54
      $region22: #{_lambda_.9} parent=15 // pred_check_branch
        %115 = sbr.rel (%p113) target = $region24
      $region23: #{_lambda_.9} parent=15 // pred_region
        %p116 = scmp.lt.s32.totalorder %s8, 1
        %s117 = scalar_select %p116, %s8, 1
        %s118 = smul.addr %s117, 2
        %s119 = smul.addr %s118, 8
        %s120 = scalar_lea.vmem %s1, %s119
      $region24: #{_lambda_.9} parent=15 // pred_fallthru
        _
    $region16: #{_lambda_.9} parent=5 // pred_fallthru
      _
    %p121 = scmp.le.s32.totalorder 1, %s8
    %p122 = scmp.lt.s32.totalorder %s8, 3
    %p123 = pnand %p121, %p122
    %p124 = pneg %p123
    // Predicated region
    $region25: #{_lambda_.9} parent=5 // pred_check
      _
    $region26: #{_lambda_.9} parent=5 // pred_check_branch
      %126 = sbr.rel (%p123) target = $region28
    $region27: #{_lambda_.9} parent=5 // pred_region
      %s127 = ssub.s32 %s8, 1
      %p128 = scmp.lt.s32.totalorder %s13, 1
      %s129 = scalar_select %p128, %s13, 1
      %s130 = smul.addr %s129, 2
      %s131 = smul.addr %s130, 8
      %s132 = scalar_lea.vmem %s0, %s131
      %p133 = pneg %p34
      %p134 = pneg %p31
      %p135 = scmp.lt.s32.totalorder %s13, 1
      %s136 = scalar_select %p135, %s13, 1
      %s137 = smul.addr %s136, 2
      %s138 = smul.addr %s137, 8
      %s139 = scalar_lea.vmem %s1, %s138
      %p140 = pneg %p60
      %p141 = pneg %p57
      %p142 = pneg %p86
      %p143 = pneg %p83
      %p144 = scmp.lt.s32.totalorder %s13, 1
      %s145 = scalar_select %p144, %s13, 1
      %s146 = smul.addr %s145, 4
      %s147 = scalar_lea.vmem %s2, %s146
      %p148 = scmp.lt.s32.totalorder %s13, 1
      %s149 = scalar_select %p148, %s13, 1
      %s150 = smul.addr %s149, 2
      %s151 = smul.addr %s150, 8
      %s152 = scalar_lea.vmem %s0, %s151
      %p153 = scmp.lt.s32.totalorder %s13, 1
      %s154 = scalar_select %p153, %s13, 1
      %s155 = smul.addr %s154, 2
      %s156 = smul.addr %s155, 8
      %s157 = scalar_lea.vmem %s1, %s156
      %p158 = scmp.lt.s32.totalorder %s13, 1
      %s159 = scalar_select %p158, %s13, 1
      %s160 = smul.addr %s159, 4
      %s161 = scalar_lea.vmem %s2, %s160
      %v162 = vld [vmem:[%s152] sm:$0xff]
      %v163 = vld [vmem:[%s152 + $0x8] sm:$0xff]
      %v164 = vld [vmem:[%s157] sm:$0xff]
      %v165 = vld [vmem:[%s157 + $0x8] sm:$0xff]
      %v166 = vadd.f32 %v162, %v163
      %v167 = vrot.slane %v166, 4
      %v168 = vadd.f32 %v166, %v167
      %v169 = vrot.slane %v168, 2
      %v170 = vadd.f32 %v168, %v169
      %v171 = vrot.slane %v170, 1
      %v172 = vadd.f32 %v170, %v171
      %v173 = vrcp.pop 16.0
      %v174 = vmul.f32 16.0, %v173
      %v175 = vsub.f32 1.0, %v174
      %v176 = vmul.f32 %v173, %v175
      %v177 = vadd.f32 %v173, %v176
      %vm178 = vweird.f32 %v173
      %v179 = vsel %vm178, %v173, %v177
      %v180 = vmul.f32 %v172, %v179
      %v181 = vlaneseq
      %vm182 = vcmp.ge.s32.totalorder %v181, 0
      %vm183 = vcmp.lt.s32.totalorder %v181, 128
      %vm184 = vmand %vm182, %vm183
      %185 = vst.msk [vmem:[%s161] sm:$0x1] %vm184, %v180
      %v186 = vadd.f32 %v164, %v165
      %v187 = vrot.slane %v186, 4
      %v188 = vadd.f32 %v186, %v187
      %v189 = vrot.slane %v188, 2
      %v190 = vadd.f32 %v188, %v189
      %v191 = vrot.slane %v190, 1
      %v192 = vadd.f32 %v190, %v191
      %v193 = vmul.f32 %v192, %v179
      %194 = vst.msk [vmem:[%s161 + $0x1] sm:$0x1] %vm184, %v193
      %v195 = vmax.f32 %v162, %v163
      %v196 = vrot.slane %v195, 4
      %v197 = vmax.f32 %v195, %v196
      %v198 = vrot.slane %v197, 2
      %v199 = vmax.f32 %v197, %v198
      %v200 = vrot.slane %v199, 1
      %v201 = vmax.f32 %v199, %v200
      %202 = vst.msk [vmem:[%s161 + $0x2] sm:$0x1] %vm184, %v201
      %v203 = vmax.f32 %v164, %v165
      %v204 = vrot.slane %v203, 4
      %v205 = vmax.f32 %v203, %v204
      %v206 = vrot.slane %v205, 2
      %v207 = vmax.f32 %v205, %v206
      %v208 = vrot.slane %v207, 1
      %v209 = vmax.f32 %v207, %v208
      %210 = vst.msk [vmem:[%s161 + $0x3] sm:$0x1] %vm184, %v209
      %p211 = scmp.lt.s32.totalorder %s13, 1
      %s212 = scalar_select %p211, %s13, 1
      %s213 = smul.addr %s212, 4
      %s214 = scalar_lea.vmem %s2, %s213
      // Predicated region
      $region29: #{_lambda_.9} parent=27 // pred_check
        %p215 = pneg %p83
      $region30: #{_lambda_.9} parent=27 // pred_check_branch
        %217 = sbr.rel (%p215) target = $region32
      $region31: #{_lambda_.9} parent=27 // pred_region
        _
      $region32: #{_lambda_.9} parent=27 // pred_fallthru
        _
    $region28: #{_lambda_.9} parent=5 // pred_fallthru
      _
    %p218 = scmp.le.s32.totalorder 2, %s8
    // Predicated region
    $region33: #{_lambda_.9} parent=5 // pred_check
      %p219 = pneg %p218
    $region34: #{_lambda_.9} parent=5 // pred_check_branch
      %221 = sbr.rel (%p219) target = $region36
    $region35: #{_lambda_.9} parent=5 // pred_region
      %s222 = ssub.s32 %s8, 2
      // Predicated region
      $region37: #{_lambda_.9} parent=35 // pred_check
        %p223 = pneg %p89
      $region38: #{_lambda_.9} parent=35 // pred_check_branch
        %225 = sbr.rel (%p223) target = $region40
      $region39: #{_lambda_.9} parent=35 // pred_region
        %p226 = scmp.lt.s32.totalorder %s14, 1
        %s227 = scalar_select %p226, %s14, 1
        %s228 = smul.addr %s227, 4
        %s229 = scalar_lea.vmem %s2, %s228
      $region40: #{_lambda_.9} parent=35 // pred_fallthru
        _
    $region36: #{_lambda_.9} parent=5 // pred_fallthru
      _
  $region6: #{_lambda_.9} parent=0 // loop_footer
    %s12 = sadd.s32 1, %s8
  $region7: #{_lambda_.9} parent=0 // loop_footer_branch
    %7 = sbr.rel target = $region3
  $region8: #{_lambda_.9} parent=0 // loop_exit
    _

// kernel: _lambda_.5
$region0: #{_lambda_.5}
  #allocation0 [shape = 'u32[]', space=smem, size = 0x4, offset = 0x4, fixed_abs, tag = 'smem constant byte address 0x4 - core index']
  #allocation1 [shape = 'u32[72,128]{1,0:T(1,128)}', space=vmem, size = 0x9000, scoped, tag = 'internal scratch']
  %s0 = inlined_call_operand.vmem [shape: f32[2,16,128], index: 0, kind: input, shape index: {}]
  %s1 = inlined_call_operand.vmem [shape: f32[2,16,128], index: 1, kind: input, shape index: {}]
  %s2 = inlined_call_operand.vmem [shape: f32[1,128], index: 2, kind: input, shape index: {}]
  %s3 = inlined_call_operand.vmem [shape: f32[1,128], index: 3, kind: input, shape index: {}]
  %s4 = inlined_call_operand.vmem [shape: f32[4,128,32], index: 4, kind: input, shape index: {}]
  %s5 = inlined_call_operand.vmem [shape: f32[4,128,32], index: 5, kind: input, shape index: {}]
  %s6 = inlined_call_operand.vmem [shape: f32[4,128,32], index: 6, kind: input, shape index: {}]
  %s7 = inlined_call_operand.vmem [shape: f32[4,32,128], index: 7, kind: input, shape index: {}]
  %s8 = inlined_call_operand.vmem [shape: f32[1,128], index: 8, kind: input, shape index: {}]
  %s9 = inlined_call_operand.vmem [shape: f32[1,128], index: 9, kind: input, shape index: {}]
  %s10 = inlined_call_operand.vmem [shape: f32[1,128], index: 10, kind: input, shape index: {}]
  %s11 = inlined_call_operand.vmem [shape: f32[128,256], index: 11, kind: input, shape index: {}]
  %s12 = inlined_call_operand.vmem [shape: f32[1,256], index: 12, kind: input, shape index: {}]
  %s13 = inlined_call_operand.vmem [shape: f32[256,128], index: 13, kind: input, shape index: {}]
  %s14 = inlined_call_operand.vmem [shape: f32[1,128], index: 14, kind: input, shape index: {}]
  %s15 = inlined_call_operand.vmem [shape: f32[1,128], index: 15, kind: input, shape index: {}]
  %s16 = inlined_call_operand.vmem [shape: f32[1,128], index: 16, kind: input, shape index: {}]
  %s17 = inlined_call_operand.vmem [shape: f32[2,16,128], index: 17, kind: output, shape index: {}]
  %s18 = sld [smem:[#allocation0]]
  $region101: #{_lambda_.5} parent=0
    _
  %s20 = ssub.s32 1, %s18
  %s21 = scalar_select 0, %s20, %s18
  loop: start=0, step=1, limit=4
  $region2: #{_lambda_.5} parent=0 // loop_pre_header
    _
  $region3: #{_lambda_.5} parent=0 // loop_header
    %s23 = sphi 0, %s27
    %p24 = scmp.ge.s32.totalorder %s23, 4
    %s33 = sphi 0, %s35
    %s36 = sphi 0, %s33
    %s37 = sphi 0, %s36
    %s53 = sphi 0, %s37
    %s59 = sphi 0, %s61
    %s62 = sphi 0, %s59
    %s63 = sphi 0, %s62
    %s79 = sphi 0, %s63
    %s83 = sphi 0, %s83
    %s85 = sphi 0, %s83
    %s86 = sphi 0, %s85
    %s100 = sphi 0, %s86
    %s104 = sphi 0, %s104
    %s106 = sphi 0, %s104
    %s107 = sphi 0, %s106
    %s121 = sphi 0, %s107
    %s125 = sphi 0, %s125
    %s127 = sphi 0, %s125
    %s128 = sphi 0, %s127
    %s142 = sphi 0, %s128
    %s146 = sphi 0, %s146
    %s148 = sphi 0, %s146
    %s149 = sphi 0, %s148
    %s163 = sphi 0, %s149
    %s167 = sphi 0, %s167
    %s169 = sphi 0, %s167
    %s170 = sphi 0, %s169
    %s184 = sphi 0, %s170
    %s188 = sphi 0, %s188
    %s190 = sphi 0, %s188
    %s191 = sphi 0, %s190
    %s205 = sphi 0, %s191
    %s209 = sphi 0, %s209
    %s211 = sphi 0, %s209
    %s212 = sphi 0, %s211
    %s226 = sphi 0, %s212
    %s230 = sphi 0, %s230
    %s232 = sphi 0, %s230
    %s233 = sphi 0, %s232
    %s247 = sphi 0, %s233
    %s251 = sphi 0, %s251
    %s253 = sphi 0, %s251
    %s254 = sphi 0, %s253
    %s268 = sphi 0, %s254
    %s272 = sphi 0, %s272
    %s274 = sphi 0, %s272
    %s275 = sphi 0, %s274
    %s289 = sphi 0, %s275
    %s293 = sphi 0, %s293
    %s295 = sphi 0, %s293
    %s296 = sphi 0, %s295
    %s310 = sphi 0, %s296
    %s314 = sphi 0, %s314
    %s316 = sphi 0, %s314
    %s317 = sphi 0, %s316
    %s331 = sphi 0, %s317
    %s335 = sphi 0, %s335
    %s337 = sphi 0, %s335
    %s338 = sphi 0, %s337
    %s352 = sphi 0, %s338
    %s356 = sphi 0, %s356
    %s358 = sphi 0, %s356
    %s359 = sphi 0, %s358
    %s373 = sphi 0, %s359
    %s377 = sphi 0, %s377
    %s379 = sphi 0, %s377
    %s380 = sphi 0, %s379
    %s394 = sphi 0, %s380
    %s400 = sphi 0, %s402
    %s403 = sphi 0, %s400
    %s404 = sphi 0, %s403
    %s420 = sphi 0, %s404
  $region4: #{_lambda_.5} parent=0 // loop_header_branch
    %26 = sbr.rel (%p24) target = $region8
  $region5: #{_lambda_.5} parent=0 // loop_body
    %s28 = ssub.s32 %s23, 1
    %s29 = ssub.s32 %s23, 2
    %s30 = sadd.s32 %s23, 1
    %s31 = ssub.s32 %s23, %s30
    %p32 = scmp.eq.s32.totalorder %s31, 0
    %s34 = sadd.s32 %s33, 1
    %s35 = scalar_select %p32, %s33, %s34
    %p38 = pneg %p32
    %p39 = scmp.eq.s32.totalorder %s23, 1
    %p40 = por %p38, %p39
    %p41 = scmp.ne.s32.totalorder %s33, %s36
    %p42 = scmp.eq.s32.totalorder %s23, 0
    %p43 = por %p41, %p42
    %p44 = scmp.ne.s32.totalorder %s33, %s36
    %p45 = scmp.eq.s32.totalorder %s28, 1
    %p46 = por %p44, %p45
    %p47 = scmp.ne.s32.totalorder %s36, %s37
    %p48 = scmp.eq.s32.totalorder %s28, 0
    %p49 = por %p47, %p48
    %p50 = scmp.ne.s32.totalorder %s36, %s37
    %p51 = scmp.eq.s32.totalorder %s29, 1
    %p52 = por %p50, %p51
    %p54 = scmp.ne.s32.totalorder %s37, %s53
    %p55 = scmp.eq.s32.totalorder %s29, 0
    %p56 = por %p54, %p55
    %s57 = ssub.s32 %s23, %s30
    %p58 = scmp.eq.s32.totalorder %s57, 0
    %s60 = sadd.s32 %s59, 1
    %s61 = scalar_select %p58, %s59, %s60
    %p64 = pneg %p58
    %p65 = scmp.eq.s32.totalorder %s23, 1
    %p66 = por %p64, %p65
    %p67 = scmp.ne.s32.totalorder %s59, %s62
    %p68 = scmp.eq.s32.totalorder %s23, 0
    %p69 = por %p67, %p68
    %p70 = scmp.ne.s32.totalorder %s59, %s62
    %p71 = scmp.eq.s32.totalorder %s28, 1
    %p72 = por %p70, %p71
    %p73 = scmp.ne.s32.totalorder %s62, %s63
    %p74 = scmp.eq.s32.totalorder %s28, 0
    %p75 = por %p73, %p74
    %p76 = scmp.ne.s32.totalorder %s62, %s63
    %p77 = scmp.eq.s32.totalorder %s29, 1
    %p78 = por %p76, %p77
    %p80 = scmp.ne.s32.totalorder %s63, %s79
    %p81 = scmp.eq.s32.totalorder %s29, 0
    %p82 = por %p80, %p81
    %s84 = sadd.s32 %s83, 1
    %p87 = scmp.eq.s32.totalorder %s23, 1
    %p88 = scmp.ne.s32.totalorder %s83, %s85
    %p89 = scmp.eq.s32.totalorder %s23, 0
    %p90 = por %p88, %p89
    %p91 = scmp.ne.s32.totalorder %s83, %s85
    %p92 = scmp.eq.s32.totalorder %s28, 1
    %p93 = por %p91, %p92
    %p94 = scmp.ne.s32.totalorder %s85, %s86
    %p95 = scmp.eq.s32.totalorder %s28, 0
    %p96 = por %p94, %p95
    %p97 = scmp.ne.s32.totalorder %s85, %s86
    %p98 = scmp.eq.s32.totalorder %s29, 1
    %p99 = por %p97, %p98
    %p101 = scmp.ne.s32.totalorder %s86, %s100
    %p102 = scmp.eq.s32.totalorder %s29, 0
    %p103 = por %p101, %p102
    %s105 = sadd.s32 %s104, 1
    %p108 = scmp.eq.s32.totalorder %s23, 1
    %p109 = scmp.ne.s32.totalorder %s104, %s106
    %p110 = scmp.eq.s32.totalorder %s23, 0
    %p111 = por %p109, %p110
    %p112 = scmp.ne.s32.totalorder %s104, %s106
    %p113 = scmp.eq.s32.totalorder %s28, 1
    %p114 = por %p112, %p113
    %p115 = scmp.ne.s32.totalorder %s106, %s107
    %p116 = scmp.eq.s32.totalorder %s28, 0
    %p117 = por %p115, %p116
    %p118 = scmp.ne.s32.totalorder %s106, %s107
    %p119 = scmp.eq.s32.totalorder %s29, 1
    %p120 = por %p118, %p119
    %p122 = scmp.ne.s32.totalorder %s107, %s121
    %p123 = scmp.eq.s32.totalorder %s29, 0
    %p124 = por %p122, %p123
    %s126 = sadd.s32 %s125, 1
    %p129 = scmp.eq.s32.totalorder %s23, 1
    %p130 = scmp.ne.s32.totalorder %s125, %s127
    %p131 = scmp.eq.s32.totalorder %s23, 0
    %p132 = por %p130, %p131
    %p133 = scmp.ne.s32.totalorder %s125, %s127
    %p134 = scmp.eq.s32.totalorder %s28, 1
    %p135 = por %p133, %p134
    %p136 = scmp.ne.s32.totalorder %s127, %s128
    %p137 = scmp.eq.s32.totalorder %s28, 0
    %p138 = por %p136, %p137
    %p139 = scmp.ne.s32.totalorder %s127, %s128
    %p140 = scmp.eq.s32.totalorder %s29, 1
    %p141 = por %p139, %p140
    %p143 = scmp.ne.s32.totalorder %s128, %s142
    %p144 = scmp.eq.s32.totalorder %s29, 0
    %p145 = por %p143, %p144
    %s147 = sadd.s32 %s146, 1
    %p150 = scmp.eq.s32.totalorder %s23, 1
    %p151 = scmp.ne.s32.totalorder %s146, %s148
    %p152 = scmp.eq.s32.totalorder %s23, 0
    %p153 = por %p151, %p152
    %p154 = scmp.ne.s32.totalorder %s146, %s148
    %p155 = scmp.eq.s32.totalorder %s28, 1
    %p156 = por %p154, %p155
    %p157 = scmp.ne.s32.totalorder %s148, %s149
    %p158 = scmp.eq.s32.totalorder %s28, 0
    %p159 = por %p157, %p158
    %p160 = scmp.ne.s32.totalorder %s148, %s149
    %p161 = scmp.eq.s32.totalorder %s29, 1
    %p162 = por %p160, %p161
    %p164 = scmp.ne.s32.totalorder %s149, %s163
    %p165 = scmp.eq.s32.totalorder %s29, 0
    %p166 = por %p164, %p165
    %s168 = sadd.s32 %s167, 1
    %p171 = scmp.eq.s32.totalorder %s23, 1
    %p172 = scmp.ne.s32.totalorder %s167, %s169
    %p173 = scmp.eq.s32.totalorder %s23, 0
    %p174 = por %p172, %p173
    %p175 = scmp.ne.s32.totalorder %s167, %s169
    %p176 = scmp.eq.s32.totalorder %s28, 1
    %p177 = por %p175, %p176
    %p178 = scmp.ne.s32.totalorder %s169, %s170
    %p179 = scmp.eq.s32.totalorder %s28, 0
    %p180 = por %p178, %p179
    %p181 = scmp.ne.s32.totalorder %s169, %s170
    %p182 = scmp.eq.s32.totalorder %s29, 1
    %p183 = por %p181, %p182
    %p185 = scmp.ne.s32.totalorder %s170, %s184
    %p186 = scmp.eq.s32.totalorder %s29, 0
    %p187 = por %p185, %p186
    %s189 = sadd.s32 %s188, 1
    %p192 = scmp.eq.s32.totalorder %s23, 1
    %p193 = scmp.ne.s32.totalorder %s188, %s190
    %p194 = scmp.eq.s32.totalorder %s23, 0
    %p195 = por %p193, %p194
    %p196 = scmp.ne.s32.totalorder %s188, %s190
    %p197 = scmp.eq.s32.totalorder %s28, 1
    %p198 = por %p196, %p197
    %p199 = scmp.ne.s32.totalorder %s190, %s191
    %p200 = scmp.eq.s32.totalorder %s28, 0
    %p201 = por %p199, %p200
    %p202 = scmp.ne.s32.totalorder %s190, %s191
    %p203 = scmp.eq.s32.totalorder %s29, 1
    %p204 = por %p202, %p203
    %p206 = scmp.ne.s32.totalorder %s191, %s205
    %p207 = scmp.eq.s32.totalorder %s29, 0
    %p208 = por %p206, %p207
    %s210 = sadd.s32 %s209, 1
    %p213 = scmp.eq.s32.totalorder %s23, 1
    %p214 = scmp.ne.s32.totalorder %s209, %s211
    %p215 = scmp.eq.s32.totalorder %s23, 0
    %p216 = por %p214, %p215
    %p217 = scmp.ne.s32.totalorder %s209, %s211
    %p218 = scmp.eq.s32.totalorder %s28, 1
    %p219 = por %p217, %p218
    %p220 = scmp.ne.s32.totalorder %s211, %s212
    %p221 = scmp.eq.s32.totalorder %s28, 0
    %p222 = por %p220, %p221
    %p223 = scmp.ne.s32.totalorder %s211, %s212
    %p224 = scmp.eq.s32.totalorder %s29, 1
    %p225 = por %p223, %p224
    %p227 = scmp.ne.s32.totalorder %s212, %s226
    %p228 = scmp.eq.s32.totalorder %s29, 0
    %p229 = por %p227, %p228
    %s231 = sadd.s32 %s230, 1
    %p234 = scmp.eq.s32.totalorder %s23, 1
    %p235 = scmp.ne.s32.totalorder %s230, %s232
    %p236 = scmp.eq.s32.totalorder %s23, 0
    %p237 = por %p235, %p236
    %p238 = scmp.ne.s32.totalorder %s230, %s232
    %p239 = scmp.eq.s32.totalorder %s28, 1
    %p240 = por %p238, %p239
    %p241 = scmp.ne.s32.totalorder %s232, %s233
    %p242 = scmp.eq.s32.totalorder %s28, 0
    %p243 = por %p241, %p242
    %p244 = scmp.ne.s32.totalorder %s232, %s233
    %p245 = scmp.eq.s32.totalorder %s29, 1
    %p246 = por %p244, %p245
    %p248 = scmp.ne.s32.totalorder %s233, %s247
    %p249 = scmp.eq.s32.totalorder %s29, 0
    %p250 = por %p248, %p249
    %s252 = sadd.s32 %s251, 1
    %p255 = scmp.eq.s32.totalorder %s23, 1
    %p256 = scmp.ne.s32.totalorder %s251, %s253
    %p257 = scmp.eq.s32.totalorder %s23, 0
    %p258 = por %p256, %p257
    %p259 = scmp.ne.s32.totalorder %s251, %s253
    %p260 = scmp.eq.s32.totalorder %s28, 1
    %p261 = por %p259, %p260
    %p262 = scmp.ne.s32.totalorder %s253, %s254
    %p263 = scmp.eq.s32.totalorder %s28, 0
    %p264 = por %p262, %p263
    %p265 = scmp.ne.s32.totalorder %s253, %s254
    %p266 = scmp.eq.s32.totalorder %s29, 1
    %p267 = por %p265, %p266
    %p269 = scmp.ne.s32.totalorder %s254, %s268
    %p270 = scmp.eq.s32.totalorder %s29, 0
    %p271 = por %p269, %p270
    %s273 = sadd.s32 %s272, 1
    %p276 = scmp.eq.s32.totalorder %s23, 1
    %p277 = scmp.ne.s32.totalorder %s272, %s274
    %p278 = scmp.eq.s32.totalorder %s23, 0
    %p279 = por %p277, %p278
    %p280 = scmp.ne.s32.totalorder %s272, %s274
    %p281 = scmp.eq.s32.totalorder %s28, 1
    %p282 = por %p280, %p281
    %p283 = scmp.ne.s32.totalorder %s274, %s275
    %p284 = scmp.eq.s32.totalorder %s28, 0
    %p285 = por %p283, %p284
    %p286 = scmp.ne.s32.totalorder %s274, %s275
    %p287 = scmp.eq.s32.totalorder %s29, 1
    %p288 = por %p286, %p287
    %p290 = scmp.ne.s32.totalorder %s275, %s289
    %p291 = scmp.eq.s32.totalorder %s29, 0
    %p292 = por %p290, %p291
    %s294 = sadd.s32 %s293, 1
    %p297 = scmp.eq.s32.totalorder %s23, 1
    %p298 = scmp.ne.s32.totalorder %s293, %s295
    %p299 = scmp.eq.s32.totalorder %s23, 0
    %p300 = por %p298, %p299
    %p301 = scmp.ne.s32.totalorder %s293, %s295
    %p302 = scmp.eq.s32.totalorder %s28, 1
    %p303 = por %p301, %p302
    %p304 = scmp.ne.s32.totalorder %s295, %s296
    %p305 = scmp.eq.s32.totalorder %s28, 0
    %p306 = por %p304, %p305
    %p307 = scmp.ne.s32.totalorder %s295, %s296
    %p308 = scmp.eq.s32.totalorder %s29, 1
    %p309 = por %p307, %p308
    %p311 = scmp.ne.s32.totalorder %s296, %s310
    %p312 = scmp.eq.s32.totalorder %s29, 0
    %p313 = por %p311, %p312
    %s315 = sadd.s32 %s314, 1
    %p318 = scmp.eq.s32.totalorder %s23, 1
    %p319 = scmp.ne.s32.totalorder %s314, %s316
    %p320 = scmp.eq.s32.totalorder %s23, 0
    %p321 = por %p319, %p320
    %p322 = scmp.ne.s32.totalorder %s314, %s316
    %p323 = scmp.eq.s32.totalorder %s28, 1
    %p324 = por %p322, %p323
    %p325 = scmp.ne.s32.totalorder %s316, %s317
    %p326 = scmp.eq.s32.totalorder %s28, 0
    %p327 = por %p325, %p326
    %p328 = scmp.ne.s32.totalorder %s316, %s317
    %p329 = scmp.eq.s32.totalorder %s29, 1
    %p330 = por %p328, %p329
    %p332 = scmp.ne.s32.totalorder %s317, %s331
    %p333 = scmp.eq.s32.totalorder %s29, 0
    %p334 = por %p332, %p333
    %s336 = sadd.s32 %s335, 1
    %p339 = scmp.eq.s32.totalorder %s23, 1
    %p340 = scmp.ne.s32.totalorder %s335, %s337
    %p341 = scmp.eq.s32.totalorder %s23, 0
    %p342 = por %p340, %p341
    %p343 = scmp.ne.s32.totalorder %s335, %s337
    %p344 = scmp.eq.s32.totalorder %s28, 1
    %p345 = por %p343, %p344
    %p346 = scmp.ne.s32.totalorder %s337, %s338
    %p347 = scmp.eq.s32.totalorder %s28, 0
    %p348 = por %p346, %p347
    %p349 = scmp.ne.s32.totalorder %s337, %s338
    %p350 = scmp.eq.s32.totalorder %s29, 1
    %p351 = por %p349, %p350
    %p353 = scmp.ne.s32.totalorder %s338, %s352
    %p354 = scmp.eq.s32.totalorder %s29, 0
    %p355 = por %p353, %p354
    %s357 = sadd.s32 %s356, 1
    %p360 = scmp.eq.s32.totalorder %s23, 1
    %p361 = scmp.ne.s32.totalorder %s356, %s358
    %p362 = scmp.eq.s32.totalorder %s23, 0
    %p363 = por %p361, %p362
    %p364 = scmp.ne.s32.totalorder %s356, %s358
    %p365 = scmp.eq.s32.totalorder %s28, 1
    %p366 = por %p364, %p365
    %p367 = scmp.ne.s32.totalorder %s358, %s359
    %p368 = scmp.eq.s32.totalorder %s28, 0
    %p369 = por %p367, %p368
    %p370 = scmp.ne.s32.totalorder %s358, %s359
    %p371 = scmp.eq.s32.totalorder %s29, 1
    %p372 = por %p370, %p371
    %p374 = scmp.ne.s32.totalorder %s359, %s373
    %p375 = scmp.eq.s32.totalorder %s29, 0
    %p376 = por %p374, %p375
    %s378 = sadd.s32 %s377, 1
    %p381 = scmp.eq.s32.totalorder %s23, 1
    %p382 = scmp.ne.s32.totalorder %s377, %s379
    %p383 = scmp.eq.s32.totalorder %s23, 0
    %p384 = por %p382, %p383
    %p385 = scmp.ne.s32.totalorder %s377, %s379
    %p386 = scmp.eq.s32.totalorder %s28, 1
    %p387 = por %p385, %p386
    %p388 = scmp.ne.s32.totalorder %s379, %s380
    %p389 = scmp.eq.s32.totalorder %s28, 0
    %p390 = por %p388, %p389
    %p391 = scmp.ne.s32.totalorder %s379, %s380
    %p392 = scmp.eq.s32.totalorder %s29, 1
    %p393 = por %p391, %p392
    %p395 = scmp.ne.s32.totalorder %s380, %s394
    %p396 = scmp.eq.s32.totalorder %s29, 0
    %p397 = por %p395, %p396
    %s398 = ssub.s32 %s23, %s30
    %p399 = scmp.eq.s32.totalorder %s398, 0
    %s401 = sadd.s32 %s400, 1
    %s402 = scalar_select %p399, %s400, %s401
    %p405 = pneg %p399
    %p406 = scmp.eq.s32.totalorder %s23, 1
    %p407 = por %p405, %p406
    %p408 = scmp.ne.s32.totalorder %s400, %s403
    %p409 = scmp.eq.s32.totalorder %s23, 0
    %p410 = por %p408, %p409
    %p411 = scmp.ne.s32.totalorder %s400, %s403
    %p412 = scmp.eq.s32.totalorder %s28, 1
    %p413 = por %p411, %p412
    %p414 = scmp.ne.s32.totalorder %s403, %s404
    %p415 = scmp.eq.s32.totalorder %s28, 0
    %p416 = por %p414, %p415
    %p417 = scmp.ne.s32.totalorder %s403, %s404
    %p418 = scmp.eq.s32.totalorder %s29, 1
    %p419 = por %p417, %p418
    %p421 = scmp.ne.s32.totalorder %s404, %s420
    %p422 = scmp.eq.s32.totalorder %s29, 0
    %p423 = por %p421, %p422
    %p424 = scmp.le.s32.totalorder 1, %s23
    %p425 = scmp.lt.s32.totalorder %s23, 3
    %p426 = pnand %p424, %p425
    %p427 = pneg %p426
    // Predicated region
    $region9: #{_lambda_.5} parent=5 // pred_check
      _
    $region10: #{_lambda_.5} parent=5 // pred_check_branch
      %429 = sbr.rel (%p426) target = $region12
    $region11: #{_lambda_.5} parent=5 // pred_region
      %s430 = ssub.s32 %s23, 1
      // Predicated region
      $region13: #{_lambda_.5} parent=11 // pred_check
        %p431 = pneg %p96
      $region14: #{_lambda_.5} parent=11 // pred_check_branch
        %433 = sbr.rel (%p431) target = $region16
      $region15: #{_lambda_.5} parent=11 // pred_region
        _
      $region16: #{_lambda_.5} parent=11 // pred_fallthru
        _
      // Predicated region
      $region17: #{_lambda_.5} parent=11 // pred_check
        %p434 = pneg %p117
      $region18: #{_lambda_.5} parent=11 // pred_check_branch
        %436 = sbr.rel (%p434) target = $region20
      $region19: #{_lambda_.5} parent=11 // pred_region
        _
      $region20: #{_lambda_.5} parent=11 // pred_fallthru
        _
      // Predicated region
      $region21: #{_lambda_.5} parent=11 // pred_check
        %p437 = pneg %p138
      $region22: #{_lambda_.5} parent=11 // pred_check_branch
        %439 = sbr.rel (%p437) target = $region24
      $region23: #{_lambda_.5} parent=11 // pred_region
        _
      $region24: #{_lambda_.5} parent=11 // pred_fallthru
        _
      // Predicated region
      $region25: #{_lambda_.5} parent=11 // pred_check
        %p440 = pneg %p159
      $region26: #{_lambda_.5} parent=11 // pred_check_branch
        %442 = sbr.rel (%p440) target = $region28
      $region27: #{_lambda_.5} parent=11 // pred_region
        _
      $region28: #{_lambda_.5} parent=11 // pred_fallthru
        _
      // Predicated region
      $region29: #{_lambda_.5} parent=11 // pred_check
        %p443 = pneg %p180
      $region30: #{_lambda_.5} parent=11 // pred_check_branch
        %445 = sbr.rel (%p443) target = $region32
      $region31: #{_lambda_.5} parent=11 // pred_region
        _
      $region32: #{_lambda_.5} parent=11 // pred_fallthru
        _
      // Predicated region
      $region33: #{_lambda_.5} parent=11 // pred_check
        %p446 = pneg %p201
      $region34: #{_lambda_.5} parent=11 // pred_check_branch
        %448 = sbr.rel (%p446) target = $region36
      $region35: #{_lambda_.5} parent=11 // pred_region
        _
      $region36: #{_lambda_.5} parent=11 // pred_fallthru
        _
      // Predicated region
      $region37: #{_lambda_.5} parent=11 // pred_check
        %p449 = pneg %p222
      $region38: #{_lambda_.5} parent=11 // pred_check_branch
        %451 = sbr.rel (%p449) target = $region40
      $region39: #{_lambda_.5} parent=11 // pred_region
        _
      $region40: #{_lambda_.5} parent=11 // pred_fallthru
        _
      // Predicated region
      $region41: #{_lambda_.5} parent=11 // pred_check
        %p452 = pneg %p243
      $region42: #{_lambda_.5} parent=11 // pred_check_branch
        %454 = sbr.rel (%p452) target = $region44
      $region43: #{_lambda_.5} parent=11 // pred_region
        _
      $region44: #{_lambda_.5} parent=11 // pred_fallthru
        _
      // Predicated region
      $region45: #{_lambda_.5} parent=11 // pred_check
        %p455 = pneg %p264
      $region46: #{_lambda_.5} parent=11 // pred_check_branch
        %457 = sbr.rel (%p455) target = $region48
      $region47: #{_lambda_.5} parent=11 // pred_region
        _
      $region48: #{_lambda_.5} parent=11 // pred_fallthru
        _
      // Predicated region
      $region49: #{_lambda_.5} parent=11 // pred_check
        %p458 = pneg %p285
      $region50: #{_lambda_.5} parent=11 // pred_check_branch
        %460 = sbr.rel (%p458) target = $region52
      $region51: #{_lambda_.5} parent=11 // pred_region
        _
      $region52: #{_lambda_.5} parent=11 // pred_fallthru
        _
      // Predicated region
      $region53: #{_lambda_.5} parent=11 // pred_check
        %p461 = pneg %p306
      $region54: #{_lambda_.5} parent=11 // pred_check_branch
        %463 = sbr.rel (%p461) target = $region56
      $region55: #{_lambda_.5} parent=11 // pred_region
        _
      $region56: #{_lambda_.5} parent=11 // pred_fallthru
        _
      // Predicated region
      $region57: #{_lambda_.5} parent=11 // pred_check
        %p464 = pneg %p327
      $region58: #{_lambda_.5} parent=11 // pred_check_branch
        %466 = sbr.rel (%p464) target = $region60
      $region59: #{_lambda_.5} parent=11 // pred_region
        _
      $region60: #{_lambda_.5} parent=11 // pred_fallthru
        _
      // Predicated region
      $region61: #{_lambda_.5} parent=11 // pred_check
        %p467 = pneg %p348
      $region62: #{_lambda_.5} parent=11 // pred_check_branch
        %469 = sbr.rel (%p467) target = $region64
      $region63: #{_lambda_.5} parent=11 // pred_region
        _
      $region64: #{_lambda_.5} parent=11 // pred_fallthru
        _
      // Predicated region
      $region65: #{_lambda_.5} parent=11 // pred_check
        %p470 = pneg %p369
      $region66: #{_lambda_.5} parent=11 // pred_check_branch
        %472 = sbr.rel (%p470) target = $region68
      $region67: #{_lambda_.5} parent=11 // pred_region
        _
      $region68: #{_lambda_.5} parent=11 // pred_fallthru
        _
      // Predicated region
      $region69: #{_lambda_.5} parent=11 // pred_check
        %p473 = pneg %p390
      $region70: #{_lambda_.5} parent=11 // pred_check_branch
        %475 = sbr.rel (%p473) target = $region72
      $region71: #{_lambda_.5} parent=11 // pred_region
        _
      $region72: #{_lambda_.5} parent=11 // pred_fallthru
        _
    $region12: #{_lambda_.5} parent=5 // pred_fallthru
      _
    %p476 = scmp.lt.s32.totalorder %s23, 2
    // Predicated region
    $region73: #{_lambda_.5} parent=5 // pred_check
      %p477 = pneg %p476
    $region74: #{_lambda_.5} parent=5 // pred_check_branch
      %479 = sbr.rel (%p477) target = $region76
    $region75: #{_lambda_.5} parent=5 // pred_region
      // Predicated region
      $region77: #{_lambda_.5} parent=75 // pred_check
        %p480 = pneg %p43
      $region78: #{_lambda_.5} parent=75 // pred_check_branch
        %482 = sbr.rel (%p480) target = $region80
      $region79: #{_lambda_.5} parent=75 // pred_region
        %p483 = scmp.lt.s32.totalorder %s23, 1
        %s484 = scalar_select %p483, %s23, 1
        %s485 = smul.addr %s484, 2
        %s486 = smul.addr %s485, 8
        %s487 = scalar_lea.vmem %s0, %s486
      $region80: #{_lambda_.5} parent=75 // pred_fallthru
        _
      // Predicated region
      $region81: #{_lambda_.5} parent=75 // pred_check
        %p488 = pneg %p69
      $region82: #{_lambda_.5} parent=75 // pred_check_branch
        %490 = sbr.rel (%p488) target = $region84
      $region83: #{_lambda_.5} parent=75 // pred_region
        %p491 = scmp.lt.s32.totalorder %s23, 1
        %s492 = scalar_select %p491, %s23, 1
        %s493 = smul.addr %s492, 2
        %s494 = smul.addr %s493, 8
        %s495 = scalar_lea.vmem %s1, %s494
      $region84: #{_lambda_.5} parent=75 // pred_fallthru
        _
    $region76: #{_lambda_.5} parent=5 // pred_fallthru
      _
    %p496 = scmp.le.s32.totalorder 1, %s23
    %p497 = scmp.lt.s32.totalorder %s23, 3
    %p498 = pnand %p496, %p497
    %p499 = pneg %p498
    // Predicated region
    $region85: #{_lambda_.5} parent=5 // pred_check
      _
    $region86: #{_lambda_.5} parent=5 // pred_check_branch
      %501 = sbr.rel (%p498) target = $region88
    $region87: #{_lambda_.5} parent=5 // pred_region
      %s502 = ssub.s32 %s23, 1
      %p503 = scmp.lt.s32.totalorder %s28, 1
      %s504 = scalar_select %p503, %s28, 1
      %s505 = smul.addr %s504, 2
      %s506 = smul.addr %s505, 8
      %s507 = scalar_lea.vmem %s0, %s506
      %p508 = pneg %p49
      %p509 = pneg %p46
      %p510 = scmp.lt.s32.totalorder %s28, 1
      %s511 = scalar_select %p510, %s28, 1
      %s512 = smul.addr %s511, 2
      %s513 = smul.addr %s512, 8
      %s514 = scalar_lea.vmem %s1, %s513
      %p515 = pneg %p75
      %p516 = pneg %p72
      %p517 = pneg %p96
      %p518 = pneg %p93
      %p519 = pneg %p117
      %p520 = pneg %p114
      %p521 = pneg %p138
      %p522 = pneg %p135
      %p523 = pneg %p159
      %p524 = pneg %p156
      %p525 = pneg %p180
      %p526 = pneg %p177
      %p527 = pneg %p201
      %p528 = pneg %p198
      %p529 = pneg %p222
      %p530 = pneg %p219
      %p531 = pneg %p243
      %p532 = pneg %p240
      %p533 = pneg %p264
      %p534 = pneg %p261
      %p535 = pneg %p285
      %p536 = pneg %p282
      %p537 = pneg %p306
      %p538 = pneg %p303
      %p539 = pneg %p327
      %p540 = pneg %p324
      %p541 = pneg %p348
      %p542 = pneg %p345
      %p543 = pneg %p369
      %p544 = pneg %p366
      %p545 = pneg %p390
      %p546 = pneg %p387
      %p547 = pneg %p416
      %p548 = pneg %p413
      %p549 = scmp.lt.s32.totalorder %s28, 1
      %s550 = scalar_select %p549, %s28, 1
      %s551 = smul.addr %s550, 2
      %s552 = smul.addr %s551, 8
      %s553 = scalar_lea.vmem %s17, %s552
      %p554 = scmp.lt.s32.totalorder %s28, 1
      %s555 = scalar_select %p554, %s28, 1
      %s556 = smul.addr %s555, 2
      %s557 = smul.addr %s556, 8
      %s558 = scalar_lea.vmem %s0, %s557
      %p559 = scmp.lt.s32.totalorder %s28, 1
      %s560 = scalar_select %p559, %s28, 1
      %s561 = smul.addr %s560, 2
      %s562 = smul.addr %s561, 8
      %s563 = scalar_lea.vmem %s1, %s562
      %p564 = scmp.lt.s32.totalorder %s28, 1
      %s565 = scalar_select %p564, %s28, 1
      %s566 = smul.addr %s565, 2
      %s567 = smul.addr %s566, 8
      %s568 = scalar_lea.vmem %s17, %s567
      %v569 = vld [vmem:[%s558] sm:$0xff]
      %v570 = vld [vmem:[%s558 + $0x8] sm:$0xff]
      %v571 = vld [vmem:[%s563] sm:$0xff]
      %v572 = vld [vmem:[%s563 + $0x8] sm:$0xff]
      %v573 = vld [vmem:[%s2] sm:$0x1]
      %v574 = vld [vmem:[%s3] sm:$0x1]
      %575 = vadd.xlane.f32.xlu0 %v569
      %v576 = vpop.xlane.xlu0 %575
      %577 = vadd.xlane.f32.xlu0 %v570
      %v578 = vpop.xlane.xlu0 %577
      %v579 = vrcp.pop 128.0
      %v580 = vmul.f32 128.0, %v579
      %v581 = vsub.f32 1.0, %v580
      %v582 = vmul.f32 %v579, %v581
      %v583 = vadd.f32 %v579, %v582
      %vm584 = vweird.f32 %v579
      %v585 = vsel %vm584, %v579, %v583
      %v586 = vmul.f32 %v576, %v585
      %v587 = vmul.f32 %v578, %v585
      %v588 = vsub.f32 %v569, %v586
      %v589 = vsub.f32 %v570, %v587
      %v590 = vmul.f32 %v588, %v588
      %v591 = vmul.f32 %v589, %v589
      %592 = vadd.xlane.f32.xlu0 %v590
      %v593 = vpop.xlane.xlu0 %592
      %594 = vadd.xlane.f32.xlu0 %v591
      %v595 = vpop.xlane.xlu0 %594
      %v596 = vmul.f32 %v593, %v585
      %v597 = vmul.f32 %v595, %v585
      %v598 = vadd.f32 %v596, 1e-05
      %v599 = vadd.f32 %v597, 1e-05
      %v600 = vrsqrt.pop %v598
      %v601 = vmul.f32 %v600, %v598
      %v602 = vmul.f32 %v601, %v600
      %v603 = vmul.f32 0.5, %v602
      %v604 = vsub.f32 1.5, %v603
      %v605 = vmul.f32 %v600, %v604
      %vm606 = vweird.f32 %v598
      %vm607 = vweird.f32 %v600
      %vm608 = vmor %vm606, %vm607
      %v609 = vsel %vm608, %v600, %v605
      %v610 = vrsqrt.pop %v599
      %v611 = vmul.f32 %v610, %v599
      %v612 = vmul.f32 %v611, %v610
      %v613 = vmul.f32 0.5, %v612
      %v614 = vsub.f32 1.5, %v613
      %v615 = vmul.f32 %v610, %v614
      %vm616 = vweird.f32 %v599
      %vm617 = vweird.f32 %v610
      %vm618 = vmor %vm616, %vm617
      %v619 = vsel %vm618, %v610, %v615
      %v620 = vmul.f32 %v588, %v609
      %v621 = vmul.f32 %v589, %v619
      %v623 = vperm.slane %v573, 0
      %v625 = vmul.f32 %v620, %v623
      %v626 = vmul.f32 %v621, %v623
      %v628 = vperm.slane %v574, 0
      %v630 = vadd.f32 %v625, %v628
      %v631 = vadd.f32 %v626, %v628
      %v632 = vld [vmem:[%s4] sm:$0xff]
      %v633 = vld [vmem:[%s4 + $0x8] sm:$0xff]
      %v634 = vld [vmem:[%s4 + $0x10] sm:$0xff]
      %v635 = vld [vmem:[%s4 + $0x18] sm:$0xff]
      %v636 = vld [vmem:[%s4 + $0x20] sm:$0xff]
      %v637 = vld [vmem:[%s4 + $0x28] sm:$0xff]
      %v638 = vld [vmem:[%s4 + $0x30] sm:$0xff]
      %v639 = vld [vmem:[%s4 + $0x38] sm:$0xff]
      %v640 = vld [vmem:[%s4 + $0x40] sm:$0xff]
      %v641 = vld [vmem:[%s4 + $0x48] sm:$0xff]
      %v642 = vld [vmem:[%s4 + $0x50] sm:$0xff]
      %v643 = vld [vmem:[%s4 + $0x58] sm:$0xff]
      %v644 = vld [vmem:[%s4 + $0x60] sm:$0xff]
      %v645 = vld [vmem:[%s4 + $0x68] sm:$0xff]
      %v646 = vld [vmem:[%s4 + $0x70] sm:$0xff]
      %v647 = vld [vmem:[%s4 + $0x78] sm:$0xff]
      %648 = vmatpush.msra.mxu0 %v647
      %649 = vmatpush.msra.mxu0 %v646
      %650 = vmatpush.msra.mxu0 %v645
      %651 = vmatpush.msra.mxu0 %v644
      %652 = vmatpush.msra.mxu0 %v643
      %653 = vmatpush.msra.mxu0 %v642
      %654 = vmatpush.msra.mxu0 %v641
      %655 = vmatpush.msra.mxu0 %v640
      %656 = vmatpush.msra.mxu0 %v639
      %657 = vmatpush.msra.mxu0 %v638
      %658 = vmatpush.msra.mxu0 %v637
      %659 = vmatpush.msra.mxu0 %v636
      %660 = vmatpush.msra.mxu0 %v635
      %661 = vmatpush.msra.mxu0 %v634
      %662 = vmatpush.msra.mxu0 %v633
      %663 = vmatpush.msra.mxu0 %v632
      %664 = vmatmul.f32.gmra.mxu0 %v630
      %v665 = vpop.f32.mrf.mxu0
      %v666 = vadd.f32 0.0, %v665
      %667 = vmatmul.f32.gmra.mxu0 %v631
      %v668 = vpop.f32.mrf.mxu0
      %v669 = vadd.f32 0.0, %v668
      %670 = vdwg.mxu0
      %v671 = vld [vmem:[%s5] sm:$0xff]
      %v672 = vld [vmem:[%s5 + $0x8] sm:$0xff]
      %v673 = vld [vmem:[%s5 + $0x10] sm:$0xff]
      %v674 = vld [vmem:[%s5 + $0x18] sm:$0xff]
      %v675 = vld [vmem:[%s5 + $0x20] sm:$0xff]
      %v676 = vld [vmem:[%s5 + $0x28] sm:$0xff]
      %v677 = vld [vmem:[%s5 + $0x30] sm:$0xff]
      %v678 = vld [vmem:[%s5 + $0x38] sm:$0xff]
      %v679 = vld [vmem:[%s5 + $0x40] sm:$0xff]
      %v680 = vld [vmem:[%s5 + $0x48] sm:$0xff]
      %v681 = vld [vmem:[%s5 + $0x50] sm:$0xff]
      %v682 = vld [vmem:[%s5 + $0x58] sm:$0xff]
      %v683 = vld [vmem:[%s5 + $0x60] sm:$0xff]
      %v684 = vld [vmem:[%s5 + $0x68] sm:$0xff]
      %v685 = vld [vmem:[%s5 + $0x70] sm:$0xff]
      %v686 = vld [vmem:[%s5 + $0x78] sm:$0xff]
      %687 = vmatpush.msra.mxu0 %v686
      %688 = vmatpush.msra.mxu0 %v685
      %689 = vmatpush.msra.mxu0 %v684
      %690 = vmatpush.msra.mxu0 %v683
      %691 = vmatpush.msra.mxu0 %v682
      %692 = vmatpush.msra.mxu0 %v681
      %693 = vmatpush.msra.mxu0 %v680
      %694 = vmatpush.msra.mxu0 %v679
      %695 = vmatpush.msra.mxu0 %v678
      %696 = vmatpush.msra.mxu0 %v677
      %697 = vmatpush.msra.mxu0 %v676
      %698 = vmatpush.msra.mxu0 %v675
      %699 = vmatpush.msra.mxu0 %v674
      %700 = vmatpush.msra.mxu0 %v673
      %701 = vmatpush.msra.mxu0 %v672
      %702 = vmatpush.msra.mxu0 %v671
      %703 = vmatmul.f32.gmra.mxu0 %v571
      %v704 = vpop.f32.mrf.mxu0
      %v705 = vadd.f32 0.0, %v704
      %706 = vmatmul.f32.gmra.mxu0 %v572
      %v707 = vpop.f32.mrf.mxu0
      %v708 = vadd.f32 0.0, %v707
      %709 = vdwg.mxu0
      %v710 = vld [vmem:[%s6] sm:$0xff]
      %v711 = vld [vmem:[%s6 + $0x8] sm:$0xff]
      %v712 = vld [vmem:[%s6 + $0x10] sm:$0xff]
      %v713 = vld [vmem:[%s6 + $0x18] sm:$0xff]
      %v714 = vld [vmem:[%s6 + $0x20] sm:$0xff]
      %v715 = vld [vmem:[%s6 + $0x28] sm:$0xff]
      %v716 = vld [vmem:[%s6 + $0x30] sm:$0xff]
      %v717 = vld [vmem:[%s6 + $0x38] sm:$0xff]
      %v718 = vld [vmem:[%s6 + $0x40] sm:$0xff]
      %v719 = vld [vmem:[%s6 + $0x48] sm:$0xff]
      %v720 = vld [vmem:[%s6 + $0x50] sm:$0xff]
      %v721 = vld [vmem:[%s6 + $0x58] sm:$0xff]
      %v722 = vld [vmem:[%s6 + $0x60] sm:$0xff]
      %v723 = vld [vmem:[%s6 + $0x68] sm:$0xff]
      %v724 = vld [vmem:[%s6 + $0x70] sm:$0xff]
      %v725 = vld [vmem:[%s6 + $0x78] sm:$0xff]
      %726 = vmatpush.msra.mxu0 %v725
      %727 = vmatpush.msra.mxu0 %v724
      %728 = vmatpush.msra.mxu0 %v723
      %729 = vmatpush.msra.mxu0 %v722
      %730 = vmatpush.msra.mxu0 %v721
      %731 = vmatpush.msra.mxu0 %v720
      %732 = vmatpush.msra.mxu0 %v719
      %733 = vmatpush.msra.mxu0 %v718
      %734 = vmatpush.msra.mxu0 %v717
      %735 = vmatpush.msra.mxu0 %v716
      %736 = vmatpush.msra.mxu0 %v715
      %737 = vmatpush.msra.mxu0 %v714
      %738 = vmatpush.msra.mxu0 %v713
      %739 = vmatpush.msra.mxu0 %v712
      %740 = vmatpush.msra.mxu0 %v711
      %741 = vmatpush.msra.mxu0 %v710
      %742 = vmatmul.f32.gmra.mxu0 %v571
      %v743 = vpop.f32.mrf.mxu0
      %v744 = vadd.f32 0.0, %v743
      %745 = vmatmul.f32.gmra.mxu0 %v572
      %v746 = vpop.f32.mrf.mxu0
      %v747 = vadd.f32 0.0, %v746
      %748 = vdwg.mxu0
      %vm749 = vcmask 261120
      %v751 = vsel %vm749, %v666, 0
      %v754 = vsel %vm749, %v669, 0
      %v757 = vsel %vm749, %v705, 0
      %v760 = vsel %vm749, %v708, 0
      %762 = vmatpush.xpose.msra.mxu0 0.0
      %763 = vmatpush.xpose.msra.mxu0 0.0
      %764 = vmatpush.xpose.msra.mxu0 0.0
      %765 = vmatpush.xpose.msra.mxu0 0.0
      %766 = vmatpush.xpose.msra.mxu0 0.0
      %767 = vmatpush.xpose.msra.mxu0 0.0
      %768 = vmatpush.xpose.msra.mxu0 0.0
      %769 = vmatpush.xpose.msra.mxu0 0.0
      %770 = vmatpush.xpose.msra.mxu0 0.0
      %771 = vmatpush.xpose.msra.mxu0 0.0
      %772 = vmatpush.xpose.msra.mxu0 0.0
      %773 = vmatpush.xpose.msra.mxu0 0.0
      %774 = vmatpush.xpose.msra.mxu0 0.0
      %775 = vmatpush.xpose.msra.mxu0 0.0
      %776 = vmatpush.xpose.msra.mxu0 %v760
      %777 = vmatpush.xpose.msra.mxu0 %v757
      %778 = vmatmul.f32.gmra.mxu0 %v751
      %v779 = vpop.f32.mrf.mxu0
      %v780 = vadd.f32 0.0, %v779
      %781 = vmatmul.f32.gmra.mxu0 %v754
      %v782 = vpop.f32.mrf.mxu0
      %v783 = vadd.f32 0.0, %v782
      %784 = vdwg.mxu0
      %v785 = vmul.f32 %v780, 0.17677669
      %v786 = vmul.f32 %v783, 0.17677669
      %vm787 = vcmask 130048
      %v788 = vsel %vm787, %v785, -inf
      %789 = vmax.xlane.f32.xlu0 %v788
      %v790 = vpop.xlane.xlu0 %789
      %v791 = vsel %vm787, %v786, -inf
      %792 = vmax.xlane.f32.xlu0 %v791
      %v793 = vpop.xlane.xlu0 %792
      %v794 = vsub.f32 %v785, %v790
      %v795 = vsub.f32 %v786, %v793
      %v796 = vmul.f32 %v794, 1.442695
      %v797 = vpow.pop %v796
      %v798 = vmul.f32 %v795, 1.442695
      %v799 = vpow.pop %v798
      %v800 = vsel %vm787, %v797, 0.0
      %801 = vadd.xlane.f32.xlu0 %v800
      %v802 = vpop.xlane.xlu0 %801
      %v803 = vsel %vm787, %v799, 0.0
      %804 = vadd.xlane.f32.xlu0 %v803
      %v805 = vpop.xlane.xlu0 %804
      %v806 = vrcp.pop %v802
      %v807 = vmul.f32 %v802, %v806
      %v808 = vsub.f32 1.0, %v807
      %v809 = vmul.f32 %v806, %v808
      %v810 = vadd.f32 %v806, %v809
      %vm811 = vweird.f32 %v802
      %vm812 = vweird.f32 %v806
      %vm813 = vmor %vm811, %vm812
      %v814 = vsel %vm813, %v806, %v810
      %v815 = vand.u32 2147483647, %v802
      %vm816 = vcmp.eq.f32.partialorder %v815, 8.507059e+37
      %v817 = vand.u32 %v802, 2147483648
      %v818 = vor.u32 1.1754944e-38, %v817
      %v819 = vsel %vm816, %v818, %v814
      %v820 = vmul.f32 %v797, %v819
      %v821 = vrcp.pop %v805
      %v822 = vmul.f32 %v805, %v821
      %v823 = vsub.f32 1.0, %v822
      %v824 = vmul.f32 %v821, %v823
      %v825 = vadd.f32 %v821, %v824
      %vm826 = vweird.f32 %v805
      %vm827 = vweird.f32 %v821
      %vm828 = vmor %vm826, %vm827
      %v829 = vsel %vm828, %v821, %v825
      %v830 = vand.u32 2147483647, %v805
      %vm831 = vcmp.eq.f32.partialorder %v830, 8.507059e+37
      %v832 = vand.u32 %v805, 2147483648
      %v833 = vor.u32 1.1754944e-38, %v832
      %v834 = vsel %vm831, %v833, %v829
      %v835 = vmul.f32 %v799, %v834
      %v837 = vsel %vm787, %v820, 0
      %v840 = vsel %vm787, %v835, 0
      %842 = vmatpush.msra.mxu0 0.0
      %843 = vmatpush.msra.mxu0 0.0
      %844 = vmatpush.msra.mxu0 0.0
      %845 = vmatpush.msra.mxu0 0.0
      %846 = vmatpush.msra.mxu0 0.0
      %847 = vmatpush.msra.mxu0 0.0
      %848 = vmatpush.msra.mxu0 0.0
      %849 = vmatpush.msra.mxu0 0.0
      %850 = vmatpush.msra.mxu0 0.0
      %851 = vmatpush.msra.mxu0 0.0
      %852 = vmatpush.msra.mxu0 0.0
      %853 = vmatpush.msra.mxu0 0.0
      %854 = vmatpush.msra.mxu0 0.0
      %855 = vmatpush.msra.mxu0 0.0
      %856 = vmatpush.msra.mxu0 %v747
      %857 = vmatpush.msra.mxu0 %v744
      %858 = vmatmul.f32.gmra.mxu0 %v837
      %v859 = vpop.f32.mrf.mxu0
      %v860 = vadd.f32 0.0, %v859
      %861 = vmatmul.f32.gmra.mxu0 %v840
      %v862 = vpop.f32.mrf.mxu0
      %v863 = vadd.f32 0.0, %v862
      %864 = vdwg.mxu0
      %v865 = vld [vmem:[%s7] sm:$0xff]
      %v866 = vld [vmem:[%s7 + $0x8] sm:$0xff]
      %v867 = vld [vmem:[%s7 + $0x10] sm:$0xff]
      %v868 = vld [vmem:[%s7 + $0x18] sm:$0xff]
      %s869 = scalar_lea.vmem %s4, 128
      %v870 = vld [vmem:[%s869] sm:$0xff]
      %v871 = vld [vmem:[%s869 + $0x8] sm:$0xff]
      %v872 = vld [vmem:[%s869 + $0x10] sm:$0xff]
      %v873 = vld [vmem:[%s869 + $0x18] sm:$0xff]
      %v874 = vld [vmem:[%s869 + $0x20] sm:$0xff]
      %v875 = vld [vmem:[%s869 + $0x28] sm:$0xff]
      %v876 = vld [vmem:[%s869 + $0x30] sm:$0xff]
      %v877 = vld [vmem:[%s869 + $0x38] sm:$0xff]
      %v878 = vld [vmem:[%s869 + $0x40] sm:$0xff]
      %v879 = vld [vmem:[%s869 + $0x48] sm:$0xff]
      %v880 = vld [vmem:[%s869 + $0x50] sm:$0xff]
      %v881 = vld [vmem:[%s869 + $0x58] sm:$0xff]
      %v882 = vld [vmem:[%s869 + $0x60] sm:$0xff]
      %v883 = vld [vmem:[%s869 + $0x68] sm:$0xff]
      %v884 = vld [vmem:[%s869 + $0x70] sm:$0xff]
      %v885 = vld [vmem:[%s869 + $0x78] sm:$0xff]
      %886 = vmatpush.msra.mxu0 %v885
      %887 = vmatpush.msra.mxu0 %v884
      %888 = vmatpush.msra.mxu0 %v883
      %889 = vmatpush.msra.mxu0 %v882
      %890 = vmatpush.msra.mxu0 %v881
      %891 = vmatpush.msra.mxu0 %v880
      %892 = vmatpush.msra.mxu0 %v879
      %893 = vmatpush.msra.mxu0 %v878
      %894 = vmatpush.msra.mxu0 %v877
      %895 = vmatpush.msra.mxu0 %v876
      %896 = vmatpush.msra.mxu0 %v875
      %897 = vmatpush.msra.mxu0 %v874
      %898 = vmatpush.msra.mxu0 %v873
      %899 = vmatpush.msra.mxu0 %v872
      %900 = vmatpush.msra.mxu0 %v871
      %901 = vmatpush.msra.mxu0 %v870
      %902 = vmatmul.f32.gmra.mxu0 %v630
      %v903 = vpop.f32.mrf.mxu0
      %v904 = vadd.f32 0.0, %v903
      %905 = vmatmul.f32.gmra.mxu0 %v631
      %v906 = vpop.f32.mrf.mxu0
      %v907 = vadd.f32 0.0, %v906
      %908 = vdwg.mxu0
      %s909 = scalar_lea.vmem %s5, 128
      %v910 = vld [vmem:[%s909] sm:$0xff]
      %v911 = vld [vmem:[%s909 + $0x8] sm:$0xff]
      %v912 = vld [vmem:[%s909 + $0x10] sm:$0xff]
      %v913 = vld [vmem:[%s909 + $0x18] sm:$0xff]
      %v914 = vld [vmem:[%s909 + $0x20] sm:$0xff]
      %v915 = vld [vmem:[%s909 + $0x28] sm:$0xff]
      %v916 = vld [vmem:[%s909 + $0x30] sm:$0xff]
      %v917 = vld [vmem:[%s909 + $0x38] sm:$0xff]
      %v918 = vld [vmem:[%s909 + $0x40] sm:$0xff]
      %v919 = vld [vmem:[%s909 + $0x48] sm:$0xff]
      %v920 = vld [vmem:[%s909 + $0x50] sm:$0xff]
      %v921 = vld [vmem:[%s909 + $0x58] sm:$0xff]
      %v922 = vld [vmem:[%s909 + $0x60] sm:$0xff]
      %v923 = vld [vmem:[%s909 + $0x68] sm:$0xff]
      %v924 = vld [vmem:[%s909 + $0x70] sm:$0xff]
      %v925 = vld [vmem:[%s909 + $0x78] sm:$0xff]
      %926 = vmatpush.msra.mxu0 %v925
      %927 = vmatpush.msra.mxu0 %v924
      %928 = vmatpush.msra.mxu0 %v923
      %929 = vmatpush.msra.mxu0 %v922
      %930 = vmatpush.msra.mxu0 %v921
      %931 = vmatpush.msra.mxu0 %v920
      %932 = vmatpush.msra.mxu0 %v919
      %933 = vmatpush.msra.mxu0 %v918
      %934 = vmatpush.msra.mxu0 %v917
      %935 = vmatpush.msra.mxu0 %v916
      %936 = vmatpush.msra.mxu0 %v915
      %937 = vmatpush.msra.mxu0 %v914
      %938 = vmatpush.msra.mxu0 %v913
      %939 = vmatpush.msra.mxu0 %v912
      %940 = vmatpush.msra.mxu0 %v911
      %941 = vmatpush.msra.mxu0 %v910
      %942 = vmatmul.f32.gmra.mxu0 %v571
      %v943 = vpop.f32.mrf.mxu0
      %v944 = vadd.f32 0.0, %v943
      %945 = vmatmul.f32.gmra.mxu0 %v572
      %v946 = vpop.f32.mrf.mxu0
      %v947 = vadd.f32 0.0, %v946
      %948 = vdwg.mxu0
      %s949 = scalar_lea.vmem %s6, 128
      %v950 = vld [vmem:[%s949] sm:$0xff]
      %v951 = vld [vmem:[%s949 + $0x8] sm:$0xff]
      %v952 = vld [vmem:[%s949 + $0x10] sm:$0xff]
      %v953 = vld [vmem:[%s949 + $0x18] sm:$0xff]
      %v954 = vld [vmem:[%s949 + $0x20] sm:$0xff]
      %v955 = vld [vmem:[%s949 + $0x28] sm:$0xff]
      %v956 = vld [vmem:[%s949 + $0x30] sm:$0xff]
      %v957 = vld [vmem:[%s949 + $0x38] sm:$0xff]
      %v958 = vld [vmem:[%s949 + $0x40] sm:$0xff]
      %v959 = vld [vmem:[%s949 + $0x48] sm:$0xff]
      %v960 = vld [vmem:[%s949 + $0x50] sm:$0xff]
      %v961 = vld [vmem:[%s949 + $0x58] sm:$0xff]
      %v962 = vld [vmem:[%s949 + $0x60] sm:$0xff]
      %v963 = vld [vmem:[%s949 + $0x68] sm:$0xff]
      %v964 = vld [vmem:[%s949 + $0x70] sm:$0xff]
      %v965 = vld [vmem:[%s949 + $0x78] sm:$0xff]
      %966 = vmatpush.msra.mxu0 %v965
      %967 = vmatpush.msra.mxu0 %v964
      %968 = vmatpush.msra.mxu0 %v963
      %969 = vmatpush.msra.mxu0 %v962
      %970 = vmatpush.msra.mxu0 %v961
      %971 = vmatpush.msra.mxu0 %v960
      %972 = vmatpush.msra.mxu0 %v959
      %973 = vmatpush.msra.mxu0 %v958
      %974 = vmatpush.msra.mxu0 %v957
      %975 = vmatpush.msra.mxu0 %v956
      %976 = vmatpush.msra.mxu0 %v955
      %977 = vmatpush.msra.mxu0 %v954
      %978 = vmatpush.msra.mxu0 %v953
      %979 = vmatpush.msra.mxu0 %v952
      %980 = vmatpush.msra.mxu0 %v951
      %981 = vmatpush.msra.mxu0 %v950
      %982 = vmatmul.f32.gmra.mxu0 %v571
      %v983 = vpop.f32.mrf.mxu0
      %v984 = vadd.f32 0.0, %v983
      %985 = vmatmul.f32.gmra.mxu0 %v572
      %v986 = vpop.f32.mrf.mxu0
      %v987 = vadd.f32 0.0, %v986
      %988 = vdwg.mxu0
      %v990 = vsel %vm749, %v904, 0
      %v993 = vsel %vm749, %v907, 0
      %v996 = vsel %vm749, %v944, 0
      %v999 = vsel %vm749, %v947, 0
      %1001 = vmatpush.xpose.msra.mxu0 0.0
      %1002 = vmatpush.xpose.msra.mxu0 0.0
      %1003 = vmatpush.xpose.msra.mxu0 0.0
      %1004 = vmatpush.xpose.msra.mxu0 0.0
      %1005 = vmatpush.xpose.msra.mxu0 0.0
      %1006 = vmatpush.xpose.msra.mxu0 0.0
      %1007 = vmatpush.xpose.msra.mxu0 0.0
      %1008 = vmatpush.xpose.msra.mxu0 0.0
      %1009 = vmatpush.xpose.msra.mxu0 0.0
      %1010 = vmatpush.xpose.msra.mxu0 0.0
      %1011 = vmatpush.xpose.msra.mxu0 0.0
      %1012 = vmatpush.xpose.msra.mxu0 0.0
      %1013 = vmatpush.xpose.msra.mxu0 0.0
      %1014 = vmatpush.xpose.msra.mxu0 0.0
      %1015 = vmatpush.xpose.msra.mxu0 %v999
      %1016 = vmatpush.xpose.msra.mxu0 %v996
      %1017 = vmatmul.f32.gmra.mxu0 %v990
      %v1018 = vpop.f32.mrf.mxu0
      %v1019 = vadd.f32 0.0, %v1018
      %1020 = vmatmul.f32.gmra.mxu0 %v993
      %v1021 = vpop.f32.mrf.mxu0
      %v1022 = vadd.f32 0.0, %v1021
      %1023 = vdwg.mxu0
      %v1024 = vmul.f32 %v1019, 0.17677669
      %v1025 = vmul.f32 %v1022, 0.17677669
      %v1026 = vsel %vm787, %v1024, -inf
      %1027 = vmax.xlane.f32.xlu0 %v1026
      %v1028 = vpop.xlane.xlu0 %1027
      %v1029 = vsel %vm787, %v1025, -inf
      %1030 = vmax.xlane.f32.xlu0 %v1029
      %v1031 = vpop.xlane.xlu0 %1030
      %v1032 = vsub.f32 %v1024, %v1028
      %v1033 = vsub.f32 %v1025, %v1031
      %v1034 = vmul.f32 %v1032, 1.442695
      %v1035 = vpow.pop %v1034
      %v1036 = vmul.f32 %v1033, 1.442695
      %v1037 = vpow.pop %v1036
      %v1038 = vsel %vm787, %v1035, 0.0
      %1039 = vadd.xlane.f32.xlu0 %v1038
      %v1040 = vpop.xlane.xlu0 %1039
      %v1041 = vsel %vm787, %v1037, 0.0
      %1042 = vadd.xlane.f32.xlu0 %v1041
      %v1043 = vpop.xlane.xlu0 %1042
      %v1044 = vrcp.pop %v1040
      %v1045 = vmul.f32 %v1040, %v1044
      %v1046 = vsub.f32 1.0, %v1045
      %v1047 = vmul.f32 %v1044, %v1046
      %v1048 = vadd.f32 %v1044, %v1047
      %vm1049 = vweird.f32 %v1040
      %vm1050 = vweird.f32 %v1044
      %vm1051 = vmor %vm1049, %vm1050
      %v1052 = vsel %vm1051, %v1044, %v1048
      %v1053 = vand.u32 2147483647, %v1040
      %vm1054 = vcmp.eq.f32.partialorder %v1053, 8.507059e+37
      %v1055 = vand.u32 %v1040, 2147483648
      %v1056 = vor.u32 1.1754944e-38, %v1055
      %v1057 = vsel %vm1054, %v1056, %v1052
      %v1058 = vmul.f32 %v1035, %v1057
      %v1059 = vrcp.pop %v1043
      %v1060 = vmul.f32 %v1043, %v1059
      %v1061 = vsub.f32 1.0, %v1060
      %v1062 = vmul.f32 %v1059, %v1061
      %v1063 = vadd.f32 %v1059, %v1062
      %vm1064 = vweird.f32 %v1043
      %vm1065 = vweird.f32 %v1059
      %vm1066 = vmor %vm1064, %vm1065
      %v1067 = vsel %vm1066, %v1059, %v1063
      %v1068 = vand.u32 2147483647, %v1043
      %vm1069 = vcmp.eq.f32.partialorder %v1068, 8.507059e+37
      %v1070 = vand.u32 %v1043, 2147483648
      %v1071 = vor.u32 1.1754944e-38, %v1070
      %v1072 = vsel %vm1069, %v1071, %v1067
      %v1073 = vmul.f32 %v1037, %v1072
      %v1075 = vsel %vm787, %v1058, 0
      %v1078 = vsel %vm787, %v1073, 0
      %1080 = vmatpush.msra.mxu0 0.0
      %1081 = vmatpush.msra.mxu0 0.0
      %1082 = vmatpush.msra.mxu0 0.0
      %1083 = vmatpush.msra.mxu0 0.0
      %1084 = vmatpush.msra.mxu0 0.0
      %1085 = vmatpush.msra.mxu0 0.0
      %1086 = vmatpush.msra.mxu0 0.0
      %1087 = vmatpush.msra.mxu0 0.0
      %1088 = vmatpush.msra.mxu0 0.0
      %1089 = vmatpush.msra.mxu0 0.0
      %1090 = vmatpush.msra.mxu0 0.0
      %1091 = vmatpush.msra.mxu0 0.0
      %1092 = vmatpush.msra.mxu0 0.0
      %1093 = vmatpush.msra.mxu0 0.0
      %1094 = vmatpush.msra.mxu0 %v987
      %1095 = vmatpush.msra.mxu0 %v984
      %1096 = vmatmul.f32.gmra.mxu0 %v1075
      %v1097 = vpop.f32.mrf.mxu0
      %v1098 = vadd.f32 0.0, %v1097
      %1099 = vmatmul.f32.gmra.mxu0 %v1078
      %v1100 = vpop.f32.mrf.mxu0
      %v1101 = vadd.f32 0.0, %v1100
      %1102 = vdwg.mxu0
      %s1103 = scalar_lea.vmem %s7, 32
      %v1104 = vld [vmem:[%s1103] sm:$0xff]
      %v1105 = vld [vmem:[%s1103 + $0x8] sm:$0xff]
      %v1106 = vld [vmem:[%s1103 + $0x10] sm:$0xff]
      %v1107 = vld [vmem:[%s1103 + $0x18] sm:$0xff]
      %v1109 = vsel %vm749, %v1098, 0
      %v1112 = vsel %vm749, %v1101, 0
      %1114 = vmatpush.msra.mxu0 0.0
      %1115 = vmatpush.msra.mxu0 0.0
      %1116 = vmatpush.msra.mxu0 0.0
      %1117 = vmatpush.msra.mxu0 0.0
      %1118 = vmatpush.msra.mxu0 0.0
      %1119 = vmatpush.msra.mxu0 0.0
      %1120 = vmatpush.msra.mxu0 0.0
      %1121 = vmatpush.msra.mxu0 0.0
      %1122 = vmatpush.msra.mxu0 0.0
      %1123 = vmatpush.msra.mxu0 0.0
      %1124 = vmatpush.msra.mxu0 0.0
      %1125 = vmatpush.msra.mxu0 0.0
      %1126 = vmatpush.msra.mxu0 %v1107
      %1127 = vmatpush.msra.mxu0 %v1106
      %1128 = vmatpush.msra.mxu0 %v1105
      %1129 = vmatpush.msra.mxu0 %v1104
      %1130 = vmatmul.f32.gmra.mxu0 %v1109
      %v1131 = vpop.f32.mrf.mxu0
      %v1132 = vadd.f32 0.0, %v1131
      %1133 = vmatmul.f32.gmra.mxu0 %v1112
      %v1134 = vpop.f32.mrf.mxu0
      %v1135 = vadd.f32 0.0, %v1134
      %1136 = vdwg.mxu0
      %v1138 = vsel %vm749, %v860, 0
      %v1141 = vsel %vm749, %v863, 0
      %1143 = vmatpush.msra.mxu0 0.0
      %1144 = vmatpush.msra.mxu0 0.0
      %1145 = vmatpush.msra.mxu0 0.0
      %1146 = vmatpush.msra.mxu0 0.0
      %1147 = vmatpush.msra.mxu0 0.0
      %1148 = vmatpush.msra.mxu0 0.0
      %1149 = vmatpush.msra.mxu0 0.0
      %1150 = vmatpush.msra.mxu0 0.0
      %1151 = vmatpush.msra.mxu0 0.0
      %1152 = vmatpush.msra.mxu0 0.0
      %1153 = vmatpush.msra.mxu0 0.0
      %1154 = vmatpush.msra.mxu0 0.0
      %1155 = vmatpush.msra.mxu0 %v868
      %1156 = vmatpush.msra.mxu0 %v867
      %1157 = vmatpush.msra.mxu0 %v866
      %1158 = vmatpush.msra.mxu0 %v865
      %1159 = vmatmul.f32.gmra.mxu0 %v1138
      %v1160 = vpop.f32.mrf.mxu0
      %v1161 = vadd.f32 %v1132, %v1160
      %1162 = vmatmul.f32.gmra.mxu0 %v1141
      %v1163 = vpop.f32.mrf.mxu0
      %v1164 = vadd.f32 %v1135, %v1163
      %1165 = vdwg.mxu0
      %s1166 = scalar_lea.vmem %s4, 256
      %v1167 = vld [vmem:[%s1166] sm:$0xff]
      %v1168 = vld [vmem:[%s1166 + $0x8] sm:$0xff]
      %v1169 = vld [vmem:[%s1166 + $0x10] sm:$0xff]
      %v1170 = vld [vmem:[%s1166 + $0x18] sm:$0xff]
      %v1171 = vld [vmem:[%s1166 + $0x20] sm:$0xff]
      %v1172 = vld [vmem:[%s1166 + $0x28] sm:$0xff]
      %v1173 = vld [vmem:[%s1166 + $0x30] sm:$0xff]
      %v1174 = vld [vmem:[%s1166 + $0x38] sm:$0xff]
      %v1175 = vld [vmem:[%s1166 + $0x40] sm:$0xff]
      %v1176 = vld [vmem:[%s1166 + $0x48] sm:$0xff]
      %v1177 = vld [vmem:[%s1166 + $0x50] sm:$0xff]
      %v1178 = vld [vmem:[%s1166 + $0x58] sm:$0xff]
      %v1179 = vld [vmem:[%s1166 + $0x60] sm:$0xff]
      %v1180 = vld [vmem:[%s1166 + $0x68] sm:$0xff]
      %v1181 = vld [vmem:[%s1166 + $0x70] sm:$0xff]
      %v1182 = vld [vmem:[%s1166 + $0x78] sm:$0xff]
      %1183 = vmatpush.msra.mxu0 %v1182
      %1184 = vmatpush.msra.mxu0 %v1181
      %1185 = vmatpush.msra.mxu0 %v1180
      %1186 = vmatpush.msra.mxu0 %v1179
      %1187 = vmatpush.msra.mxu0 %v1178
      %1188 = vmatpush.msra.mxu0 %v1177
      %1189 = vmatpush.msra.mxu0 %v1176
      %1190 = vmatpush.msra.mxu0 %v1175
      %1191 = vmatpush.msra.mxu0 %v1174
      %1192 = vmatpush.msra.mxu0 %v1173
      %1193 = vmatpush.msra.mxu0 %v1172
      %1194 = vmatpush.msra.mxu0 %v1171
      %1195 = vmatpush.msra.mxu0 %v1170
      %1196 = vmatpush.msra.mxu0 %v1169
      %1197 = vmatpush.msra.mxu0 %v1168
      %1198 = vmatpush.msra.mxu0 %v1167
      %1199 = vmatmul.f32.gmra.mxu0 %v630
      %v1200 = vpop.f32.mrf.mxu0
      %v1201 = vadd.f32 0.0, %v1200
      %1202 = vmatmul.f32.gmra.mxu0 %v631
      %v1203 = vpop.f32.mrf.mxu0
      %v1204 = vadd.f32 0.0, %v1203
      %1205 = vdwg.mxu0
      %s1206 = scalar_lea.vmem %s5, 256
      %v1207 = vld [vmem:[%s1206] sm:$0xff]
      %v1208 = vld [vmem:[%s1206 + $0x8] sm:$0xff]
      %v1209 = vld [vmem:[%s1206 + $0x10] sm:$0xff]
      %v1210 = vld [vmem:[%s1206 + $0x18] sm:$0xff]
      %v1211 = vld [vmem:[%s1206 + $0x20] sm:$0xff]
      %v1212 = vld [vmem:[%s1206 + $0x28] sm:$0xff]
      %v1213 = vld [vmem:[%s1206 + $0x30] sm:$0xff]
      %v1214 = vld [vmem:[%s1206 + $0x38] sm:$0xff]
      %v1215 = vld [vmem:[%s1206 + $0x40] sm:$0xff]
      %v1216 = vld [vmem:[%s1206 + $0x48] sm:$0xff]
      %v1217 = vld [vmem:[%s1206 + $0x50] sm:$0xff]
      %v1218 = vld [vmem:[%s1206 + $0x58] sm:$0xff]
      %v1219 = vld [vmem:[%s1206 + $0x60] sm:$0xff]
      %v1220 = vld [vmem:[%s1206 + $0x68] sm:$0xff]
      %v1221 = vld [vmem:[%s1206 + $0x70] sm:$0xff]
      %v1222 = vld [vmem:[%s1206 + $0x78] sm:$0xff]
      %1223 = vmatpush.msra.mxu0 %v1222
      %1224 = vmatpush.msra.mxu0 %v1221
      %1225 = vmatpush.msra.mxu0 %v1220
      %1226 = vmatpush.msra.mxu0 %v1219
      %1227 = vmatpush.msra.mxu0 %v1218
      %1228 = vmatpush.msra.mxu0 %v1217
      %1229 = vmatpush.msra.mxu0 %v1216
      %1230 = vmatpush.msra.mxu0 %v1215
      %1231 = vmatpush.msra.mxu0 %v1214
      %1232 = vmatpush.msra.mxu0 %v1213
      %1233 = vmatpush.msra.mxu0 %v1212
      %1234 = vmatpush.msra.mxu0 %v1211
      %1235 = vmatpush.msra.mxu0 %v1210
      %1236 = vmatpush.msra.mxu0 %v1209
      %1237 = vmatpush.msra.mxu0 %v1208
      %1238 = vmatpush.msra.mxu0 %v1207
      %1239 = vmatmul.f32.gmra.mxu0 %v571
      %v1240 = vpop.f32.mrf.mxu0
      %v1241 = vadd.f32 0.0, %v1240
      %1242 = vmatmul.f32.gmra.mxu0 %v572
      %v1243 = vpop.f32.mrf.mxu0
      %v1244 = vadd.f32 0.0, %v1243
      %1245 = vdwg.mxu0
      %s1246 = scalar_lea.vmem %s6, 256
      %v1247 = vld [vmem:[%s1246] sm:$0xff]
      %v1248 = vld [vmem:[%s1246 + $0x8] sm:$0xff]
      %v1249 = vld [vmem:[%s1246 + $0x10] sm:$0xff]
      %v1250 = vld [vmem:[%s1246 + $0x18] sm:$0xff]
      %v1251 = vld [vmem:[%s1246 + $0x20] sm:$0xff]
      %v1252 = vld [vmem:[%s1246 + $0x28] sm:$0xff]
      %v1253 = vld [vmem:[%s1246 + $0x30] sm:$0xff]
      %v1254 = vld [vmem:[%s1246 + $0x38] sm:$0xff]
      %v1255 = vld [vmem:[%s1246 + $0x40] sm:$0xff]
      %v1256 = vld [vmem:[%s1246 + $0x48] sm:$0xff]
      %v1257 = vld [vmem:[%s1246 + $0x50] sm:$0xff]
      %v1258 = vld [vmem:[%s1246 + $0x58] sm:$0xff]
      %v1259 = vld [vmem:[%s1246 + $0x60] sm:$0xff]
      %v1260 = vld [vmem:[%s1246 + $0x68] sm:$0xff]
      %v1261 = vld [vmem:[%s1246 + $0x70] sm:$0xff]
      %v1262 = vld [vmem:[%s1246 + $0x78] sm:$0xff]
      %1263 = vmatpush.msra.mxu0 %v1262
      %1264 = vmatpush.msra.mxu0 %v1261
      %1265 = vmatpush.msra.mxu0 %v1260
      %1266 = vmatpush.msra.mxu0 %v1259
      %1267 = vmatpush.msra.mxu0 %v1258
      %1268 = vmatpush.msra.mxu0 %v1257
      %1269 = vmatpush.msra.mxu0 %v1256
      %1270 = vmatpush.msra.mxu0 %v1255
      %1271 = vmatpush.msra.mxu0 %v1254
      %1272 = vmatpush.msra.mxu0 %v1253
      %1273 = vmatpush.msra.mxu0 %v1252
      %1274 = vmatpush.msra.mxu0 %v1251
      %1275 = vmatpush.msra.mxu0 %v1250
      %1276 = vmatpush.msra.mxu0 %v1249
      %1277 = vmatpush.msra.mxu0 %v1248
      %1278 = vmatpush.msra.mxu0 %v1247
      %1279 = vmatmul.f32.gmra.mxu0 %v571
      %v1280 = vpop.f32.mrf.mxu0
      %v1281 = vadd.f32 0.0, %v1280
      %1282 = vmatmul.f32.gmra.mxu0 %v572
      %v1283 = vpop.f32.mrf.mxu0
      %v1284 = vadd.f32 0.0, %v1283
      %1285 = vdwg.mxu0
      %v1287 = vsel %vm749, %v1201, 0
      %v1290 = vsel %vm749, %v1204, 0
      %v1293 = vsel %vm749, %v1241, 0
      %v1296 = vsel %vm749, %v1244, 0
      %1298 = vmatpush.xpose.msra.mxu0 0.0
      %1299 = vmatpush.xpose.msra.mxu0 0.0
      %1300 = vmatpush.xpose.msra.mxu0 0.0
      %1301 = vmatpush.xpose.msra.mxu0 0.0
      %1302 = vmatpush.xpose.msra.mxu0 0.0
      %1303 = vmatpush.xpose.msra.mxu0 0.0
      %1304 = vmatpush.xpose.msra.mxu0 0.0
      %1305 = vmatpush.xpose.msra.mxu0 0.0
      %1306 = vmatpush.xpose.msra.mxu0 0.0
      %1307 = vmatpush.xpose.msra.mxu0 0.0
      %1308 = vmatpush.xpose.msra.mxu0 0.0
      %1309 = vmatpush.xpose.msra.mxu0 0.0
      %1310 = vmatpush.xpose.msra.mxu0 0.0
      %1311 = vmatpush.xpose.msra.mxu0 0.0
      %1312 = vmatpush.xpose.msra.mxu0 %v1296
      %1313 = vmatpush.xpose.msra.mxu0 %v1293
      %1314 = vmatmul.f32.gmra.mxu0 %v1287
      %v1315 = vpop.f32.mrf.mxu0
      %v1316 = vadd.f32 0.0, %v1315
      %1317 = vmatmul.f32.gmra.mxu0 %v1290
      %v1318 = vpop.f32.mrf.mxu0
      %v1319 = vadd.f32 0.0, %v1318
      %1320 = vdwg.mxu0
      %v1321 = vmul.f32 %v1316, 0.17677669
      %v1322 = vmul.f32 %v1319, 0.17677669
      %v1323 = vsel %vm787, %v1321, -inf
      %1324 = vmax.xlane.f32.xlu0 %v1323
      %v1325 = vpop.xlane.xlu0 %1324
      %v1326 = vsel %vm787, %v1322, -inf
      %1327 = vmax.xlane.f32.xlu0 %v1326
      %v1328 = vpop.xlane.xlu0 %1327
      %v1329 = vsub.f32 %v1321, %v1325
      %v1330 = vsub.f32 %v1322, %v1328
      %v1331 = vmul.f32 %v1329, 1.442695
      %v1332 = vpow.pop %v1331
      %v1333 = vmul.f32 %v1330, 1.442695
      %v1334 = vpow.pop %v1333
      %v1335 = vsel %vm787, %v1332, 0.0
      %1336 = vadd.xlane.f32.xlu0 %v1335
      %v1337 = vpop.xlane.xlu0 %1336
      %v1338 = vsel %vm787, %v1334, 0.0
      %1339 = vadd.xlane.f32.xlu0 %v1338
      %v1340 = vpop.xlane.xlu0 %1339
      %v1341 = vrcp.pop %v1337
      %v1342 = vmul.f32 %v1337, %v1341
      %v1343 = vsub.f32 1.0, %v1342
      %v1344 = vmul.f32 %v1341, %v1343
      %v1345 = vadd.f32 %v1341, %v1344
      %vm1346 = vweird.f32 %v1337
      %vm1347 = vweird.f32 %v1341
      %vm1348 = vmor %vm1346, %vm1347
      %v1349 = vsel %vm1348, %v1341, %v1345
      %v1350 = vand.u32 2147483647, %v1337
      %vm1351 = vcmp.eq.f32.partialorder %v1350, 8.507059e+37
      %v1352 = vand.u32 %v1337, 2147483648
      %v1353 = vor.u32 1.1754944e-38, %v1352
      %v1354 = vsel %vm1351, %v1353, %v1349
      %v1355 = vmul.f32 %v1332, %v1354
      %v1356 = vrcp.pop %v1340
      %v1357 = vmul.f32 %v1340, %v1356
      %v1358 = vsub.f32 1.0, %v1357
      %v1359 = vmul.f32 %v1356, %v1358
      %v1360 = vadd.f32 %v1356, %v1359
      %vm1361 = vweird.f32 %v1340
      %vm1362 = vweird.f32 %v1356
      %vm1363 = vmor %vm1361, %vm1362
      %v1364 = vsel %vm1363, %v1356, %v1360
      %v1365 = vand.u32 2147483647, %v1340
      %vm1366 = vcmp.eq.f32.partialorder %v1365, 8.507059e+37
      %v1367 = vand.u32 %v1340, 2147483648
      %v1368 = vor.u32 1.1754944e-38, %v1367
      %v1369 = vsel %vm1366, %v1368, %v1364
      %v1370 = vmul.f32 %v1334, %v1369
      %v1372 = vsel %vm787, %v1355, 0
      %v1375 = vsel %vm787, %v1370, 0
      %1377 = vmatpush.msra.mxu0 0.0
      %1378 = vmatpush.msra.mxu0 0.0
      %1379 = vmatpush.msra.mxu0 0.0
      %1380 = vmatpush.msra.mxu0 0.0
      %1381 = vmatpush.msra.mxu0 0.0
      %1382 = vmatpush.msra.mxu0 0.0
      %1383 = vmatpush.msra.mxu0 0.0
      %1384 = vmatpush.msra.mxu0 0.0
      %1385 = vmatpush.msra.mxu0 0.0
      %1386 = vmatpush.msra.mxu0 0.0
      %1387 = vmatpush.msra.mxu0 0.0
      %1388 = vmatpush.msra.mxu0 0.0
      %1389 = vmatpush.msra.mxu0 0.0
      %1390 = vmatpush.msra.mxu0 0.0
      %1391 = vmatpush.msra.mxu0 %v1284
      %1392 = vmatpush.msra.mxu0 %v1281
      %1393 = vmatmul.f32.gmra.mxu0 %v1372
      %v1394 = vpop.f32.mrf.mxu0
      %v1395 = vadd.f32 0.0, %v1394
      %1396 = vmatmul.f32.gmra.mxu0 %v1375
      %v1397 = vpop.f32.mrf.mxu0
      %v1398 = vadd.f32 0.0, %v1397
      %1399 = vdwg.mxu0
      %s1400 = scalar_lea.vmem %s7, 64
      %v1401 = vld [vmem:[%s1400] sm:$0xff]
      %v1402 = vld [vmem:[%s1400 + $0x8] sm:$0xff]
      %v1403 = vld [vmem:[%s1400 + $0x10] sm:$0xff]
      %v1404 = vld [vmem:[%s1400 + $0x18] sm:$0xff]
      %v1406 = vsel %vm749, %v1395, 0
      %v1409 = vsel %vm749, %v1398, 0
      %1411 = vmatpush.msra.mxu0 0.0
      %1412 = vmatpush.msra.mxu0 0.0
      %1413 = vmatpush.msra.mxu0 0.0
      %1414 = vmatpush.msra.mxu0 0.0
      %1415 = vmatpush.msra.mxu0 0.0
      %1416 = vmatpush.msra.mxu0 0.0
      %1417 = vmatpush.msra.mxu0 0.0
      %1418 = vmatpush.msra.mxu0 0.0
      %1419 = vmatpush.msra.mxu0 0.0
      %1420 = vmatpush.msra.mxu0 0.0
      %1421 = vmatpush.msra.mxu0 0.0
      %1422 = vmatpush.msra.mxu0 0.0
      %1423 = vmatpush.msra.mxu0 %v1404
      %1424 = vmatpush.msra.mxu0 %v1403
      %1425 = vmatpush.msra.mxu0 %v1402
      %1426 = vmatpush.msra.mxu0 %v1401
      %1427 = vmatmul.f32.gmra.mxu0 %v1406
      %v1428 = vpop.f32.mrf.mxu0
      %v1429 = vadd.f32 0.0, %v1428
      %1430 = vmatmul.f32.gmra.mxu0 %v1409
      %v1431 = vpop.f32.mrf.mxu0
      %v1432 = vadd.f32 0.0, %v1431
      %1433 = vdwg.mxu0
      %v1434 = vadd.f32 %v1161, %v1429
      %v1435 = vadd.f32 %v1164, %v1432
      %s1436 = scalar_lea.vmem %s4, 384
      %v1437 = vld [vmem:[%s1436] sm:$0xff]
      %v1438 = vld [vmem:[%s1436 + $0x8] sm:$0xff]
      %v1439 = vld [vmem:[%s1436 + $0x10] sm:$0xff]
      %v1440 = vld [vmem:[%s1436 + $0x18] sm:$0xff]
      %v1441 = vld [vmem:[%s1436 + $0x20] sm:$0xff]
      %v1442 = vld [vmem:[%s1436 + $0x28] sm:$0xff]
      %v1443 = vld [vmem:[%s1436 + $0x30] sm:$0xff]
      %v1444 = vld [vmem:[%s1436 + $0x38] sm:$0xff]
      %v1445 = vld [vmem:[%s1436 + $0x40] sm:$0xff]
      %v1446 = vld [vmem:[%s1436 + $0x48] sm:$0xff]
      %v1447 = vld [vmem:[%s1436 + $0x50] sm:$0xff]
      %v1448 = vld [vmem:[%s1436 + $0x58] sm:$0xff]
      %v1449 = vld [vmem:[%s1436 + $0x60] sm:$0xff]
      %v1450 = vld [vmem:[%s1436 + $0x68] sm:$0xff]
      %v1451 = vld [vmem:[%s1436 + $0x70] sm:$0xff]
      %v1452 = vld [vmem:[%s1436 + $0x78] sm:$0xff]
      %1453 = vmatpush.msra.mxu0 %v1452
      %1454 = vmatpush.msra.mxu0 %v1451
      %1455 = vmatpush.msra.mxu0 %v1450
      %1456 = vmatpush.msra.mxu0 %v1449
      %1457 = vmatpush.msra.mxu0 %v1448
      %1458 = vmatpush.msra.mxu0 %v1447
      %1459 = vmatpush.msra.mxu0 %v1446
      %1460 = vmatpush.msra.mxu0 %v1445
      %1461 = vmatpush.msra.mxu0 %v1444
      %1462 = vmatpush.msra.mxu0 %v1443
      %1463 = vmatpush.msra.mxu0 %v1442
      %1464 = vmatpush.msra.mxu0 %v1441
      %1465 = vmatpush.msra.mxu0 %v1440
      %1466 = vmatpush.msra.mxu0 %v1439
      %1467 = vmatpush.msra.mxu0 %v1438
      %1468 = vmatpush.msra.mxu0 %v1437
      %1469 = vmatmul.f32.gmra.mxu0 %v630
      %v1470 = vpop.f32.mrf.mxu0
      %v1471 = vadd.f32 0.0, %v1470
      %1472 = vmatmul.f32.gmra.mxu0 %v631
      %v1473 = vpop.f32.mrf.mxu0
      %v1474 = vadd.f32 0.0, %v1473
      %1475 = vdwg.mxu0
      %s1476 = scalar_lea.vmem %s5, 384
      %v1477 = vld [vmem:[%s1476] sm:$0xff]
      %v1478 = vld [vmem:[%s1476 + $0x8] sm:$0xff]
      %v1479 = vld [vmem:[%s1476 + $0x10] sm:$0xff]
      %v1480 = vld [vmem:[%s1476 + $0x18] sm:$0xff]
      %v1481 = vld [vmem:[%s1476 + $0x20] sm:$0xff]
      %v1482 = vld [vmem:[%s1476 + $0x28] sm:$0xff]
      %v1483 = vld [vmem:[%s1476 + $0x30] sm:$0xff]
      %v1484 = vld [vmem:[%s1476 + $0x38] sm:$0xff]
      %v1485 = vld [vmem:[%s1476 + $0x40] sm:$0xff]
      %v1486 = vld [vmem:[%s1476 + $0x48] sm:$0xff]
      %v1487 = vld [vmem:[%s1476 + $0x50] sm:$0xff]
      %v1488 = vld [vmem:[%s1476 + $0x58] sm:$0xff]
      %v1489 = vld [vmem:[%s1476 + $0x60] sm:$0xff]
      %v1490 = vld [vmem:[%s1476 + $0x68] sm:$0xff]
      %v1491 = vld [vmem:[%s1476 + $0x70] sm:$0xff]
      %v1492 = vld [vmem:[%s1476 + $0x78] sm:$0xff]
      %1493 = vmatpush.msra.mxu0 %v1492
      %1494 = vmatpush.msra.mxu0 %v1491
      %1495 = vmatpush.msra.mxu0 %v1490
      %1496 = vmatpush.msra.mxu0 %v1489
      %1497 = vmatpush.msra.mxu0 %v1488
      %1498 = vmatpush.msra.mxu0 %v1487
      %1499 = vmatpush.msra.mxu0 %v1486
      %1500 = vmatpush.msra.mxu0 %v1485
      %1501 = vmatpush.msra.mxu0 %v1484
      %1502 = vmatpush.msra.mxu0 %v1483
      %1503 = vmatpush.msra.mxu0 %v1482
      %1504 = vmatpush.msra.mxu0 %v1481
      %1505 = vmatpush.msra.mxu0 %v1480
      %1506 = vmatpush.msra.mxu0 %v1479
      %1507 = vmatpush.msra.mxu0 %v1478
      %1508 = vmatpush.msra.mxu0 %v1477
      %1509 = vmatmul.f32.gmra.mxu0 %v571
      %v1510 = vpop.f32.mrf.mxu0
      %v1511 = vadd.f32 0.0, %v1510
      %1512 = vmatmul.f32.gmra.mxu0 %v572
      %v1513 = vpop.f32.mrf.mxu0
      %v1514 = vadd.f32 0.0, %v1513
      %1515 = vdwg.mxu0
      %s1516 = scalar_lea.vmem %s6, 384
      %v1517 = vld [vmem:[%s1516] sm:$0xff]
      %v1518 = vld [vmem:[%s1516 + $0x8] sm:$0xff]
      %v1519 = vld [vmem:[%s1516 + $0x10] sm:$0xff]
      %v1520 = vld [vmem:[%s1516 + $0x18] sm:$0xff]
      %v1521 = vld [vmem:[%s1516 + $0x20] sm:$0xff]
      %v1522 = vld [vmem:[%s1516 + $0x28] sm:$0xff]
      %v1523 = vld [vmem:[%s1516 + $0x30] sm:$0xff]
      %v1524 = vld [vmem:[%s1516 + $0x38] sm:$0xff]
      %v1525 = vld [vmem:[%s1516 + $0x40] sm:$0xff]
      %v1526 = vld [vmem:[%s1516 + $0x48] sm:$0xff]
      %v1527 = vld [vmem:[%s1516 + $0x50] sm:$0xff]
      %v1528 = vld [vmem:[%s1516 + $0x58] sm:$0xff]
      %v1529 = vld [vmem:[%s1516 + $0x60] sm:$0xff]
      %v1530 = vld [vmem:[%s1516 + $0x68] sm:$0xff]
      %v1531 = vld [vmem:[%s1516 + $0x70] sm:$0xff]
      %v1532 = vld [vmem:[%s1516 + $0x78] sm:$0xff]
      %1533 = vmatpush.msra.mxu0 %v1532
      %1534 = vmatpush.msra.mxu0 %v1531
      %1535 = vmatpush.msra.mxu0 %v1530
      %1536 = vmatpush.msra.mxu0 %v1529
      %1537 = vmatpush.msra.mxu0 %v1528
      %1538 = vmatpush.msra.mxu0 %v1527
      %1539 = vmatpush.msra.mxu0 %v1526
      %1540 = vmatpush.msra.mxu0 %v1525
      %1541 = vmatpush.msra.mxu0 %v1524
      %1542 = vmatpush.msra.mxu0 %v1523
      %1543 = vmatpush.msra.mxu0 %v1522
      %1544 = vmatpush.msra.mxu0 %v1521
      %1545 = vmatpush.msra.mxu0 %v1520
      %1546 = vmatpush.msra.mxu0 %v1519
      %1547 = vmatpush.msra.mxu0 %v1518
      %1548 = vmatpush.msra.mxu0 %v1517
      %1549 = vmatmul.f32.gmra.mxu0 %v571
      %v1550 = vpop.f32.mrf.mxu0
      %v1551 = vadd.f32 0.0, %v1550
      %1552 = vmatmul.f32.gmra.mxu0 %v572
      %v1553 = vpop.f32.mrf.mxu0
      %v1554 = vadd.f32 0.0, %v1553
      %1555 = vdwg.mxu0
      %v1557 = vsel %vm749, %v1471, 0
      %v1560 = vsel %vm749, %v1474, 0
      %v1563 = vsel %vm749, %v1511, 0
      %v1566 = vsel %vm749, %v1514, 0
      %1568 = vmatpush.xpose.msra.mxu0 0.0
      %1569 = vmatpush.xpose.msra.mxu0 0.0
      %1570 = vmatpush.xpose.msra.mxu0 0.0
      %1571 = vmatpush.xpose.msra.mxu0 0.0
      %1572 = vmatpush.xpose.msra.mxu0 0.0
      %1573 = vmatpush.xpose.msra.mxu0 0.0
      %1574 = vmatpush.xpose.msra.mxu0 0.0
      %1575 = vmatpush.xpose.msra.mxu0 0.0
      %1576 = vmatpush.xpose.msra.mxu0 0.0
      %1577 = vmatpush.xpose.msra.mxu0 0.0
      %1578 = vmatpush.xpose.msra.mxu0 0.0
      %1579 = vmatpush.xpose.msra.mxu0 0.0
      %1580 = vmatpush.xpose.msra.mxu0 0.0
      %1581 = vmatpush.xpose.msra.mxu0 0.0
      %1582 = vmatpush.xpose.msra.mxu0 %v1566
      %1583 = vmatpush.xpose.msra.mxu0 %v1563
      %1584 = vmatmul.f32.gmra.mxu0 %v1557
      %v1585 = vpop.f32.mrf.mxu0
      %v1586 = vadd.f32 0.0, %v1585
      %1587 = vmatmul.f32.gmra.mxu0 %v1560
      %v1588 = vpop.f32.mrf.mxu0
      %v1589 = vadd.f32 0.0, %v1588
      %1590 = vdwg.mxu0
      %v1591 = vmul.f32 %v1586, 0.17677669
      %v1592 = vmul.f32 %v1589, 0.17677669
      %v1593 = vsel %vm787, %v1591, -inf
      %1594 = vmax.xlane.f32.xlu0 %v1593
      %v1595 = vpop.xlane.xlu0 %1594
      %v1596 = vsel %vm787, %v1592, -inf
      %1597 = vmax.xlane.f32.xlu0 %v1596
      %v1598 = vpop.xlane.xlu0 %1597
      %v1599 = vsub.f32 %v1591, %v1595
      %v1600 = vsub.f32 %v1592, %v1598
      %v1601 = vmul.f32 %v1599, 1.442695
      %v1602 = vpow.pop %v1601
      %v1603 = vmul.f32 %v1600, 1.442695
      %v1604 = vpow.pop %v1603
      %v1605 = vsel %vm787, %v1602, 0.0
      %1606 = vadd.xlane.f32.xlu0 %v1605
      %v1607 = vpop.xlane.xlu0 %1606
      %v1608 = vsel %vm787, %v1604, 0.0
      %1609 = vadd.xlane.f32.xlu0 %v1608
      %v1610 = vpop.xlane.xlu0 %1609
      %v1611 = vrcp.pop %v1607
      %v1612 = vmul.f32 %v1607, %v1611
      %v1613 = vsub.f32 1.0, %v1612
      %v1614 = vmul.f32 %v1611, %v1613
      %v1615 = vadd.f32 %v1611, %v1614
      %vm1616 = vweird.f32 %v1607
      %vm1617 = vweird.f32 %v1611
      %vm1618 = vmor %vm1616, %vm1617
      %v1619 = vsel %vm1618, %v1611, %v1615
      %v1620 = vand.u32 2147483647, %v1607
      %vm1621 = vcmp.eq.f32.partialorder %v1620, 8.507059e+37
      %v1622 = vand.u32 %v1607, 2147483648
      %v1623 = vor.u32 1.1754944e-38, %v1622
      %v1624 = vsel %vm1621, %v1623, %v1619
      %v1625 = vmul.f32 %v1602, %v1624
      %v1626 = vrcp.pop %v1610
      %v1627 = vmul.f32 %v1610, %v1626
      %v1628 = vsub.f32 1.0, %v1627
      %v1629 = vmul.f32 %v1626, %v1628
      %v1630 = vadd.f32 %v1626, %v1629
      %vm1631 = vweird.f32 %v1610
      %vm1632 = vweird.f32 %v1626
      %vm1633 = vmor %vm1631, %vm1632
      %v1634 = vsel %vm1633, %v1626, %v1630
      %v1635 = vand.u32 2147483647, %v1610
      %vm1636 = vcmp.eq.f32.partialorder %v1635, 8.507059e+37
      %v1637 = vand.u32 %v1610, 2147483648
      %v1638 = vor.u32 1.1754944e-38, %v1637
      %v1639 = vsel %vm1636, %v1638, %v1634
      %v1640 = vmul.f32 %v1604, %v1639
      %v1642 = vsel %vm787, %v1625, 0
      %v1645 = vsel %vm787, %v1640, 0
      %1647 = vmatpush.msra.mxu0 0.0
      %1648 = vmatpush.msra.mxu0 0.0
      %1649 = vmatpush.msra.mxu0 0.0
      %1650 = vmatpush.msra.mxu0 0.0
      %1651 = vmatpush.msra.mxu0 0.0
      %1652 = vmatpush.msra.mxu0 0.0
      %1653 = vmatpush.msra.mxu0 0.0
      %1654 = vmatpush.msra.mxu0 0.0
      %1655 = vmatpush.msra.mxu0 0.0
      %1656 = vmatpush.msra.mxu0 0.0
      %1657 = vmatpush.msra.mxu0 0.0
      %1658 = vmatpush.msra.mxu0 0.0
      %1659 = vmatpush.msra.mxu0 0.0
      %1660 = vmatpush.msra.mxu0 0.0
      %1661 = vmatpush.msra.mxu0 %v1554
      %1662 = vmatpush.msra.mxu0 %v1551
      %1663 = vmatmul.f32.gmra.mxu0 %v1642
      %v1664 = vpop.f32.mrf.mxu0
      %v1665 = vadd.f32 0.0, %v1664
      %1666 = vmatmul.f32.gmra.mxu0 %v1645
      %v1667 = vpop.f32.mrf.mxu0
      %v1668 = vadd.f32 0.0, %v1667
      %1669 = vdwg.mxu0
      %s1670 = scalar_lea.vmem %s7, 96
      %v1671 = vld [vmem:[%s1670] sm:$0xff]
      %v1672 = vld [vmem:[%s1670 + $0x8] sm:$0xff]
      %v1673 = vld [vmem:[%s1670 + $0x10] sm:$0xff]
      %v1674 = vld [vmem:[%s1670 + $0x18] sm:$0xff]
      %v1676 = vsel %vm749, %v1665, 0
      %v1679 = vsel %vm749, %v1668, 0
      %1681 = vmatpush.msra.mxu0 0.0
      %1682 = vmatpush.msra.mxu0 0.0
      %1683 = vmatpush.msra.mxu0 0.0
      %1684 = vmatpush.msra.mxu0 0.0
      %1685 = vmatpush.msra.mxu0 0.0
      %1686 = vmatpush.msra.mxu0 0.0
      %1687 = vmatpush.msra.mxu0 0.0
      %1688 = vmatpush.msra.mxu0 0.0
      %1689 = vmatpush.msra.mxu0 0.0
      %1690 = vmatpush.msra.mxu0 0.0
      %1691 = vmatpush.msra.mxu0 0.0
      %1692 = vmatpush.msra.mxu0 0.0
      %1693 = vmatpush.msra.mxu0 %v1674
      %1694 = vmatpush.msra.mxu0 %v1673
      %1695 = vmatpush.msra.mxu0 %v1672
      %1696 = vmatpush.msra.mxu0 %v1671
      %1697 = vmatmul.f32.gmra.mxu0 %v1676
      %v1698 = vpop.f32.mrf.mxu0
      %v1699 = vadd.f32 0.0, %v1698
      %1700 = vmatmul.f32.gmra.mxu0 %v1679
      %v1701 = vpop.f32.mrf.mxu0
      %v1702 = vadd.f32 0.0, %v1701
      %1703 = vdwg.mxu0
      %v1704 = vadd.f32 %v1434, %v1699
      %v1705 = vadd.f32 %v1435, %v1702
      %v1706 = vld [vmem:[%s8] sm:$0x1]
      %v1708 = vperm.slane %v1706, 0
      %v1710 = vadd.f32 %v1704, %v1708
      %v1711 = vadd.f32 %v1705, %v1708
      %v1712 = vadd.f32 %v1710, %v569
      %v1713 = vadd.f32 %v1711, %v570
      %v1714 = vld [vmem:[%s9] sm:$0x1]
      %v1715 = vld [vmem:[%s10] sm:$0x1]
      %1716 = vadd.xlane.f32.xlu0 %v1712
      %v1717 = vpop.xlane.xlu0 %1716
      %1718 = vadd.xlane.f32.xlu0 %v1713
      %v1719 = vpop.xlane.xlu0 %1718
      %v1720 = vmul.f32 %v1717, %v585
      %v1721 = vmul.f32 %v1719, %v585
      %v1722 = vsub.f32 %v1712, %v1720
      %v1723 = vsub.f32 %v1713, %v1721
      %v1724 = vmul.f32 %v1722, %v1722
      %v1725 = vmul.f32 %v1723, %v1723
      %1726 = vadd.xlane.f32.xlu0 %v1724
      %v1727 = vpop.xlane.xlu0 %1726
      %1728 = vadd.xlane.f32.xlu0 %v1725
      %v1729 = vpop.xlane.xlu0 %1728
      %v1730 = vmul.f32 %v1727, %v585
      %v1731 = vmul.f32 %v1729, %v585
      %v1732 = vadd.f32 %v1730, 1e-05
      %v1733 = vadd.f32 %v1731, 1e-05
      %v1734 = vrsqrt.pop %v1732
      %v1735 = vmul.f32 %v1734, %v1732
      %v1736 = vmul.f32 %v1735, %v1734
      %v1737 = vmul.f32 0.5, %v1736
      %v1738 = vsub.f32 1.5, %v1737
      %v1739 = vmul.f32 %v1734, %v1738
      %vm1740 = vweird.f32 %v1732
      %vm1741 = vweird.f32 %v1734
      %vm1742 = vmor %vm1740, %vm1741
      %v1743 = vsel %vm1742, %v1734, %v1739
      %v1744 = vrsqrt.pop %v1733
      %v1745 = vmul.f32 %v1744, %v1733
      %v1746 = vmul.f32 %v1745, %v1744
      %v1747 = vmul.f32 0.5, %v1746
      %v1748 = vsub.f32 1.5, %v1747
      %v1749 = vmul.f32 %v1744, %v1748
      %vm1750 = vweird.f32 %v1733
      %vm1751 = vweird.f32 %v1744
      %vm1752 = vmor %vm1750, %vm1751
      %v1753 = vsel %vm1752, %v1744, %v1749
      %v1754 = vmul.f32 %v1722, %v1743
      %v1755 = vmul.f32 %v1723, %v1753
      %v1757 = vperm.slane %v1714, 0
      %v1759 = vmul.f32 %v1754, %v1757
      %v1760 = vmul.f32 %v1755, %v1757
      %v1762 = vperm.slane %v1715, 0
      %v1764 = vadd.f32 %v1759, %v1762
      %v1765 = vadd.f32 %v1760, %v1762
      %v1766 = vld [vmem:[%s11] sm:$0xff]
      %v1767 = vld [vmem:[%s11 + $0x8] sm:$0xff]
      %v1768 = vld [vmem:[%s11 + $0x10] sm:$0xff]
      %v1769 = vld [vmem:[%s11 + $0x18] sm:$0xff]
      %v1770 = vld [vmem:[%s11 + $0x20] sm:$0xff]
      %v1771 = vld [vmem:[%s11 + $0x28] sm:$0xff]
      %v1772 = vld [vmem:[%s11 + $0x30] sm:$0xff]
      %v1773 = vld [vmem:[%s11 + $0x38] sm:$0xff]
      %v1774 = vld [vmem:[%s11 + $0x40] sm:$0xff]
      %v1775 = vld [vmem:[%s11 + $0x48] sm:$0xff]
      %v1776 = vld [vmem:[%s11 + $0x50] sm:$0xff]
      %v1777 = vld [vmem:[%s11 + $0x58] sm:$0xff]
      %v1778 = vld [vmem:[%s11 + $0x60] sm:$0xff]
      %v1779 = vld [vmem:[%s11 + $0x68] sm:$0xff]
      %v1780 = vld [vmem:[%s11 + $0x70] sm:$0xff]
      %v1781 = vld [vmem:[%s11 + $0x78] sm:$0xff]
      %v1782 = vld [vmem:[%s11 + $0x80] sm:$0xff]
      %v1783 = vld [vmem:[%s11 + $0x88] sm:$0xff]
      %v1784 = vld [vmem:[%s11 + $0x90] sm:$0xff]
      %v1785 = vld [vmem:[%s11 + $0x98] sm:$0xff]
      %v1786 = vld [vmem:[%s11 + $0xa0] sm:$0xff]
      %v1787 = vld [vmem:[%s11 + $0xa8] sm:$0xff]
      %v1788 = vld [vmem:[%s11 + $0xb0] sm:$0xff]
      %v1789 = vld [vmem:[%s11 + $0xb8] sm:$0xff]
      %v1790 = vld [vmem:[%s11 + $0xc0] sm:$0xff]
      %v1791 = vld [vmem:[%s11 + $0xc8] sm:$0xff]
      %v1792 = vld [vmem:[%s11 + $0xd0] sm:$0xff]
      %v1793 = vld [vmem:[%s11 + $0xd8] sm:$0xff]
      %v1794 = vld [vmem:[%s11 + $0xe0] sm:$0xff]
      %v1795 = vld [vmem:[%s11 + $0xe8] sm:$0xff]
      %v1796 = vld [vmem:[%s11 + $0xf0] sm:$0xff]
      %v1797 = vld [vmem:[%s11 + $0xf8] sm:$0xff]
      %v1798 = vld [vmem:[%s12] sm:$0x3]
      %v1800 = vperm.slane %v1798, 0
      %v1801 = vperm.slane %v1798, 1
      %1804 = vmatpush.msra.mxu0 %v1796
      %1805 = vmatpush.msra.mxu0 %v1794
      %1806 = vmatpush.msra.mxu0 %v1792
      %1807 = vmatpush.msra.mxu0 %v1790
      %1808 = vmatpush.msra.mxu0 %v1788
      %1809 = vmatpush.msra.mxu0 %v1786
      %1810 = vmatpush.msra.mxu0 %v1784
      %1811 = vmatpush.msra.mxu0 %v1782
      %1812 = vmatpush.msra.mxu0 %v1780
      %1813 = vmatpush.msra.mxu0 %v1778
      %1814 = vmatpush.msra.mxu0 %v1776
      %1815 = vmatpush.msra.mxu0 %v1774
      %1816 = vmatpush.msra.mxu0 %v1772
      %1817 = vmatpush.msra.mxu0 %v1770
      %1818 = vmatpush.msra.mxu0 %v1768
      %1819 = vmatpush.msra.mxu0 %v1766
      %1820 = vmatmul.f32.gmra.mxu0 %v1764
      %v1821 = vpop.f32.mrf.mxu0
      %v1822 = vadd.f32 %v1800, %v1821
      %1823 = vmatmul.f32.gmra.mxu0 %v1765
      %v1824 = vpop.f32.mrf.mxu0
      %v1825 = vadd.f32 %v1800, %v1824
      %1826 = vdwg.mxu0
      %1827 = vmatpush.msra.mxu0 %v1797
      %1828 = vmatpush.msra.mxu0 %v1795
      %1829 = vmatpush.msra.mxu0 %v1793
      %1830 = vmatpush.msra.mxu0 %v1791
      %1831 = vmatpush.msra.mxu0 %v1789
      %1832 = vmatpush.msra.mxu0 %v1787
      %1833 = vmatpush.msra.mxu0 %v1785
      %1834 = vmatpush.msra.mxu0 %v1783
      %1835 = vmatpush.msra.mxu0 %v1781
      %1836 = vmatpush.msra.mxu0 %v1779
      %1837 = vmatpush.msra.mxu0 %v1777
      %1838 = vmatpush.msra.mxu0 %v1775
      %1839 = vmatpush.msra.mxu0 %v1773
      %1840 = vmatpush.msra.mxu0 %v1771
      %1841 = vmatpush.msra.mxu0 %v1769
      %1842 = vmatpush.msra.mxu0 %v1767
      %1843 = vmatmul.f32.gmra.mxu0 %v1764
      %v1844 = vpop.f32.mrf.mxu0
      %v1845 = vadd.f32 %v1801, %v1844
      %1846 = vmatmul.f32.gmra.mxu0 %v1765
      %v1847 = vpop.f32.mrf.mxu0
      %v1848 = vadd.f32 %v1801, %v1847
      %1849 = vdwg.mxu0
      %v1850 = vmul.f32 %v1822, 0.5
      %v1851 = vmul.f32 %v1845, 0.5
      %v1852 = vmul.f32 %v1825, 0.5
      %v1853 = vmul.f32 %v1848, 0.5
      %v1854 = vmul.f32 %v1822, 0.044715
      %v1855 = vmul.f32 %v1845, 0.044715
      %v1856 = vmul.f32 %v1825, 0.044715
      %v1857 = vmul.f32 %v1848, 0.044715
      %v1858 = vmul.f32 %v1854, %v1822
      %v1859 = vmul.f32 %v1855, %v1845
      %v1860 = vmul.f32 %v1856, %v1825
      %v1861 = vmul.f32 %v1857, %v1848
      %v1862 = vmul.f32 %v1858, %v1822
      %v1863 = vmul.f32 %v1859, %v1845
      %v1864 = vmul.f32 %v1860, %v1825
      %v1865 = vmul.f32 %v1861, %v1848
      %v1866 = vadd.f32 %v1822, %v1862
      %v1867 = vadd.f32 %v1845, %v1863
      %v1868 = vadd.f32 %v1825, %v1864
      %v1869 = vadd.f32 %v1848, %v1865
      %v1870 = vmul.f32 %v1866, 0.7978846
      %v1871 = vmul.f32 %v1867, 0.7978846
      %v1872 = vmul.f32 %v1868, 0.7978846
      %v1873 = vmul.f32 %v1869, 0.7978846
      %v1874 = vtanh.pop %v1870
      %v1875 = vtanh.pop %v1871
      %v1876 = vtanh.pop %v1872
      %v1877 = vtanh.pop %v1873
      %v1878 = vadd.f32 %v1874, 1.0
      %v1879 = vadd.f32 %v1875, 1.0
      %v1880 = vadd.f32 %v1876, 1.0
      %v1881 = vadd.f32 %v1877, 1.0
      %v1882 = vmul.f32 %v1850, %v1878
      %v1883 = vmul.f32 %v1851, %v1879
      %v1884 = vmul.f32 %v1852, %v1880
      %v1885 = vmul.f32 %v1853, %v1881
      %v1886 = vld [vmem:[%s13] sm:$0xff]
      %v1887 = vld [vmem:[%s13 + $0x8] sm:$0xff]
      %v1888 = vld [vmem:[%s13 + $0x10] sm:$0xff]
      %v1889 = vld [vmem:[%s13 + $0x18] sm:$0xff]
      %v1890 = vld [vmem:[%s13 + $0x20] sm:$0xff]
      %v1891 = vld [vmem:[%s13 + $0x28] sm:$0xff]
      %v1892 = vld [vmem:[%s13 + $0x30] sm:$0xff]
      %v1893 = vld [vmem:[%s13 + $0x38] sm:$0xff]
      %v1894 = vld [vmem:[%s13 + $0x40] sm:$0xff]
      %v1895 = vld [vmem:[%s13 + $0x48] sm:$0xff]
      %v1896 = vld [vmem:[%s13 + $0x50] sm:$0xff]
      %v1897 = vld [vmem:[%s13 + $0x58] sm:$0xff]
      %v1898 = vld [vmem:[%s13 + $0x60] sm:$0xff]
      %v1899 = vld [vmem:[%s13 + $0x68] sm:$0xff]
      %v1900 = vld [vmem:[%s13 + $0x70] sm:$0xff]
      %v1901 = vld [vmem:[%s13 + $0x78] sm:$0xff]
      %v1902 = vld [vmem:[%s13 + $0x80] sm:$0xff]
      %v1903 = vld [vmem:[%s13 + $0x88] sm:$0xff]
      %v1904 = vld [vmem:[%s13 + $0x90] sm:$0xff]
      %v1905 = vld [vmem:[%s13 + $0x98] sm:$0xff]
      %v1906 = vld [vmem:[%s13 + $0xa0] sm:$0xff]
      %v1907 = vld [vmem:[%s13 + $0xa8] sm:$0xff]
      %v1908 = vld [vmem:[%s13 + $0xb0] sm:$0xff]
      %v1909 = vld [vmem:[%s13 + $0xb8] sm:$0xff]
      %v1910 = vld [vmem:[%s13 + $0xc0] sm:$0xff]
      %v1911 = vld [vmem:[%s13 + $0xc8] sm:$0xff]
      %v1912 = vld [vmem:[%s13 + $0xd0] sm:$0xff]
      %v1913 = vld [vmem:[%s13 + $0xd8] sm:$0xff]
      %v1914 = vld [vmem:[%s13 + $0xe0] sm:$0xff]
      %v1915 = vld [vmem:[%s13 + $0xe8] sm:$0xff]
      %v1916 = vld [vmem:[%s13 + $0xf0] sm:$0xff]
      %v1917 = vld [vmem:[%s13 + $0xf8] sm:$0xff]
      %v1918 = vld [vmem:[%s14] sm:$0x1]
      %v1920 = vperm.slane %v1918, 0
      %1922 = vmatpush.msra.mxu0 %v1901
      %1923 = vmatpush.msra.mxu0 %v1900
      %1924 = vmatpush.msra.mxu0 %v1899
      %1925 = vmatpush.msra.mxu0 %v1898
      %1926 = vmatpush.msra.mxu0 %v1897
      %1927 = vmatpush.msra.mxu0 %v1896
      %1928 = vmatpush.msra.mxu0 %v1895
      %1929 = vmatpush.msra.mxu0 %v1894
      %1930 = vmatpush.msra.mxu0 %v1893
      %1931 = vmatpush.msra.mxu0 %v1892
      %1932 = vmatpush.msra.mxu0 %v1891
      %1933 = vmatpush.msra.mxu0 %v1890
      %1934 = vmatpush.msra.mxu0 %v1889
      %1935 = vmatpush.msra.mxu0 %v1888
      %1936 = vmatpush.msra.mxu0 %v1887
      %1937 = vmatpush.msra.mxu0 %v1886
      %1938 = vmatmul.f32.gmra.mxu0 %v1882
      %v1939 = vpop.f32.mrf.mxu0
      %v1940 = vadd.f32 %v1920, %v1939
      %1941 = vmatmul.f32.gmra.mxu0 %v1884
      %v1942 = vpop.f32.mrf.mxu0
      %v1943 = vadd.f32 %v1920, %v1942
      %1944 = vdwg.mxu0
      %1945 = vmatpush.msra.mxu0 %v1917
      %1946 = vmatpush.msra.mxu0 %v1916
      %1947 = vmatpush.msra.mxu0 %v1915
      %1948 = vmatpush.msra.mxu0 %v1914
      %1949 = vmatpush.msra.mxu0 %v1913
      %1950 = vmatpush.msra.mxu0 %v1912
      %1951 = vmatpush.msra.mxu0 %v1911
      %1952 = vmatpush.msra.mxu0 %v1910
      %1953 = vmatpush.msra.mxu0 %v1909
      %1954 = vmatpush.msra.mxu0 %v1908
      %1955 = vmatpush.msra.mxu0 %v1907
      %1956 = vmatpush.msra.mxu0 %v1906
      %1957 = vmatpush.msra.mxu0 %v1905
      %1958 = vmatpush.msra.mxu0 %v1904
      %1959 = vmatpush.msra.mxu0 %v1903
      %1960 = vmatpush.msra.mxu0 %v1902
      %1961 = vmatmul.f32.gmra.mxu0 %v1883
      %v1962 = vpop.f32.mrf.mxu0
      %v1963 = vadd.f32 %v1940, %v1962
      %1964 = vmatmul.f32.gmra.mxu0 %v1885
      %v1965 = vpop.f32.mrf.mxu0
      %v1966 = vadd.f32 %v1943, %v1965
      %1967 = vdwg.mxu0
      %v1968 = vadd.f32 %v1963, %v1712
      %v1969 = vadd.f32 %v1966, %v1713
      %v1970 = vld [vmem:[%s15] sm:$0x1]
      %v1971 = vld [vmem:[%s16] sm:$0x1]
      %1972 = vadd.xlane.f32.xlu0 %v1968
      %v1973 = vpop.xlane.xlu0 %1972
      %1974 = vadd.xlane.f32.xlu0 %v1969
      %v1975 = vpop.xlane.xlu0 %1974
      %v1976 = vmul.f32 %v1973, %v585
      %v1977 = vmul.f32 %v1975, %v585
      %v1978 = vsub.f32 %v1968, %v1976
      %v1979 = vsub.f32 %v1969, %v1977
      %v1980 = vmul.f32 %v1978, %v1978
      %v1981 = vmul.f32 %v1979, %v1979
      %1982 = vadd.xlane.f32.xlu0 %v1980
      %v1983 = vpop.xlane.xlu0 %1982
      %1984 = vadd.xlane.f32.xlu0 %v1981
      %v1985 = vpop.xlane.xlu0 %1984
      %v1986 = vmul.f32 %v1983, %v585
      %v1987 = vmul.f32 %v1985, %v585
      %v1988 = vadd.f32 %v1986, 1e-05
      %v1989 = vadd.f32 %v1987, 1e-05
      %v1990 = vrsqrt.pop %v1988
      %v1991 = vmul.f32 %v1990, %v1988
      %v1992 = vmul.f32 %v1991, %v1990
      %v1993 = vmul.f32 0.5, %v1992
      %v1994 = vsub.f32 1.5, %v1993
      %v1995 = vmul.f32 %v1990, %v1994
      %vm1996 = vweird.f32 %v1988
      %vm1997 = vweird.f32 %v1990
      %vm1998 = vmor %vm1996, %vm1997
      %v1999 = vsel %vm1998, %v1990, %v1995
      %v2000 = vrsqrt.pop %v1989
      %v2001 = vmul.f32 %v2000, %v1989
      %v2002 = vmul.f32 %v2001, %v2000
      %v2003 = vmul.f32 0.5, %v2002
      %v2004 = vsub.f32 1.5, %v2003
      %v2005 = vmul.f32 %v2000, %v2004
      %vm2006 = vweird.f32 %v1989
      %vm2007 = vweird.f32 %v2000
      %vm2008 = vmor %vm2006, %vm2007
      %v2009 = vsel %vm2008, %v2000, %v2005
      %v2010 = vmul.f32 %v1978, %v1999
      %v2011 = vmul.f32 %v1979, %v2009
      %v2013 = vperm.slane %v1970, 0
      %v2015 = vmul.f32 %v2010, %v2013
      %v2016 = vmul.f32 %v2011, %v2013
      %v2018 = vperm.slane %v1971, 0
      %v2020 = vadd.f32 %v2015, %v2018
      %v2021 = vadd.f32 %v2016, %v2018
      %v2022 = vadd.f32 %v2020, %v569
      %v2023 = vadd.f32 %v2021, %v570
      %2024 = vst [vmem:[%s568] sm:$0xff] %v2022
      %2025 = vst [vmem:[%s568 + $0x8] sm:$0xff] %v2023
      %p2026 = scmp.lt.s32.totalorder %s28, 1
      %s2027 = scalar_select %p2026, %s28, 1
      %s2028 = smul.addr %s2027, 2
      %s2029 = smul.addr %s2028, 8
      %s2030 = scalar_lea.vmem %s17, %s2029
      // Predicated region
      $region89: #{_lambda_.5} parent=87 // pred_check
        %p2031 = pneg %p413
      $region90: #{_lambda_.5} parent=87 // pred_check_branch
        %2033 = sbr.rel (%p2031) target = $region92
      $region91: #{_lambda_.5} parent=87 // pred_region
        _
      $region92: #{_lambda_.5} parent=87 // pred_fallthru
        _
    $region88: #{_lambda_.5} parent=5 // pred_fallthru
      _
    %p2034 = scmp.le.s32.totalorder 2, %s23
    // Predicated region
    $region93: #{_lambda_.5} parent=5 // pred_check
      %p2035 = pneg %p2034
    $region94: #{_lambda_.5} parent=5 // pred_check_branch
      %2037 = sbr.rel (%p2035) target = $region96
    $region95: #{_lambda_.5} parent=5 // pred_region
      %s2038 = ssub.s32 %s23, 2
      // Predicated region
      $region97: #{_lambda_.5} parent=95 // pred_check
        %p2039 = pneg %p419
      $region98: #{_lambda_.5} parent=95 // pred_check_branch
        %2041 = sbr.rel (%p2039) target = $region100
      $region99: #{_lambda_.5} parent=95 // pred_region
        %p2042 = scmp.lt.s32.totalorder %s29, 1
        %s2043 = scalar_select %p2042, %s29, 1
        %s2044 = smul.addr %s2043, 2
        %s2045 = smul.addr %s2044, 8
        %s2046 = scalar_lea.vmem %s17, %s2045
      $region100: #{_lambda_.5} parent=95 // pred_fallthru
        _
    $region96: #{_lambda_.5} parent=5 // pred_fallthru
      _
  $region6: #{_lambda_.5} parent=0 // loop_footer
    %s27 = sadd.s32 1, %s23
  $region7: #{_lambda_.5} parent=0 // loop_footer_branch
    %22 = sbr.rel target = $region3
  $region8: #{_lambda_.5} parent=0 // loop_exit
    _

</llo_original>
